<compile_context>
chip_gen: v7x
topology: tpu7x:2x2x1
jax: 0.10.0
libtpu: 0.0.40
codegen_flags: <defaults>
</compile_context>

<pallas_src>
import functools
import math

import jax
import jax.numpy as jnp
from jax.experimental import pallas as pl
from jax.experimental.pallas import tpu as pltpu


def _round_up(x, m):
    return (x + m - 1) // m * m


def _mab_kernel(q_ref, k_ref,
                wq_ref, bq_ref,
                wkv_ref, bkv_ref,
                wo_ref, bo_ref,
                o_ref,
                ocat_ref,
                *, num_heads, head_dim, bt, nq, nk, scale,
                compute_dtype, approx_recip):
    """One grid step processes a block of `bt` batch elements.

    q_ref   : (bt, nq, dim_Q)   VMEM
    k_ref   : (bt, nk, dim_K)   VMEM
    wq_ref  : (dim_Q, Dp)       heads contiguous, tail zero-padded to Dp
    wkv_ref : (dim_K, 2*Dp)     fused [Wk | Wv]
    wo_ref  : (Dp, Dp)          fc_o, tail zero-padded
    b*_ref  : (1, Dp) / (1, 2*Dp) f32 biases
    o_ref   : (bt, nq, Dp)      lane-dense output (Dp % 128 == 0)
    ocat_ref: (bt*nq, Dp)       f32 VMEM scratch staging O = Qp + attn
    """
    H, ds = num_heads, head_dim
    Dp = o_ref.shape[-1]
    cdt = compute_dtype

    q2 = q_ref[...].reshape(bt * nq, q_ref.shape[-1]).astype(cdt)   # (Rq, dim_Q)
    k2 = k_ref[...].reshape(bt * nk, k_ref.shape[-1]).astype(cdt)   # (Rk, dim_K)

    # Lane-dense projections (f32 accumulation on the MXU, f32 bias add).
    qcat = jnp.dot(q2, wq_ref[...], preferred_element_type=jnp.float32) + bq_ref[...]
    kvcat = jnp.dot(k2, wkv_ref[...], preferred_element_type=jnp.float32) + bkv_ref[...]

    # Stage O = Q projection (carries the residual); tail columns are already 0
    # because the padded weight/bias columns are 0.  Single lane-dense store.
    ocat_ref[...] = qcat

    # Per-head attention; each stage is a single dot_general batched over the
    # bt batch elements (no Python loop over b).
    for h in range(H):
        lo = h * ds
        qh = qcat[:, lo:lo + ds].reshape(bt, nq, ds)              # f32
        kh = kvcat[:, lo:lo + ds].reshape(bt, nk, ds)
        vh = kvcat[:, Dp + lo:Dp + lo + ds].reshape(bt, nk, ds)

        s = jnp.einsum("bqe,bke->bqk", qh.astype(cdt), kh.astype(cdt),
                       preferred_element_type=jnp.float32) * scale
        m = jnp.max(s, axis=-1, keepdims=True)
        e = jnp.exp(s - m)
        # approx=True -> EUP vrcp slot (bf16 path); exact reciprocal on f32 path.
        a = e * pl.reciprocal(jnp.sum(e, axis=-1, keepdims=True), approx=approx_recip)

        av = jnp.einsum("bqk,bke->bqe", a.astype(cdt), vh.astype(cdt),
                        preferred_element_type=jnp.float32)
        oh = (qh + av).reshape(bt * nq, ds)                        # residual, f32
        ocat_ref[:, lo:lo + ds] = oh

    # O = O + relu(fc_o(O)) on the whole (bt*nq, Dp) block (lane-dense matmul).
    O = ocat_ref[...]
    fo = jnp.dot(O.astype(cdt), wo_ref[...],
                 preferred_element_type=jnp.float32) + bo_ref[...]
    out = O + jnp.maximum(fo, 0.0)
    o_ref[...] = out.reshape(bt, nq, Dp).astype(o_ref.dtype)


def _prep_weights(params, dim_V, Dp, compute_dtype):
    """Natural (heads-contiguous) layout, tail zero-padded; K|V fused."""
    pad_v = Dp - dim_V

    def padw(w):   # (din, dim_V) -> (din, Dp)
        return jnp.pad(w, ((0, 0), (0, pad_v)))

    def padb(b):   # (dim_V,) -> (1, Dp)
        return jnp.pad(b, (0, pad_v)).reshape(1, Dp)

    wq = padw(params["wq"]).astype(compute_dtype)
    bq = padb(params["bq"]).astype(jnp.float32)
    wkv = jnp.concatenate([padw(params["wk"]), padw(params["wv"])],
                          axis=1).astype(compute_dtype)
    bkv = jnp.concatenate([padb(params["bk"]), padb(params["bv"])],
                          axis=1).astype(jnp.float32)
    wo = jnp.pad(params["wo"], ((0, pad_v), (0, pad_v))).astype(compute_dtype)
    bo = padb(params["bo"]).astype(jnp.float32)
    return wq, bq, wkv, bkv, wo, bo


def mab_forward(Q, K, params, *, num_heads, block_b=None,
                compute_dtype=jnp.float32):
    """Pallas MAB forward.  Q: (B, Nq, dim_Q), K: (B, Nk, dim_K)."""
    B, Nq, dim_Q = Q.shape
    Bk, Nk, dim_K = K.shape
    assert Bk == B
    dim_V = params["wq"].shape[1]
    assert dim_V % num_heads == 0
    ds = dim_V // num_heads
    Dp = _round_up(dim_V, 128)          # lane-dense output / fc_o operand width

    wq, bq, wkv, bkv, wo, bo = _prep_weights(params, dim_V, Dp, compute_dtype)

    w_bytes = jnp.dtype(compute_dtype).itemsize
    in_bytes = jnp.dtype(Q.dtype).itemsize
    weight_bytes = (dim_Q * Dp + dim_K * 2 * Dp + Dp * Dp) * w_bytes + 4 * Dp * 4
    act_bytes = (Nq * dim_Q + Nk * dim_K + Nq * Dp) * in_bytes   # per batch, per buffer
    scratch_bytes = Nq * Dp * 4                                  # per batch

    if block_b is None:
        # Largest batch block that (a) keeps >= 2 grid steps when B > 1
        # (pipelining + megacore / dual-TC), (b) respects a row cap, and
        # (c) fits a conservative 40 MiB VMEM budget (v7x-safe).
        budget = 40 * 1024 * 1024 - 2 * weight_bytes
        row_cap = 1024
        block_b = 1
        for cand in range(1, B + 1):
            if B % cand:
                continue
            if B > 1 and B // cand < 2:
                continue
            if cand * max(Nq, Nk) > row_cap:
                continue
            if cand * (2 * act_bytes + scratch_bytes) > budget:
                continue
            block_b = cand
    Bt = block_b
    assert B % Bt == 0

    vmem_need = 2 * weight_bytes + Bt * (2 * act_bytes + scratch_bytes)
    vmem_limit = int(min(48 * 2 ** 20, max(32 * 2 ** 20, 2 * vmem_need)))

    kernel = functools.partial(
        _mab_kernel, num_heads=num_heads, head_dim=ds, bt=Bt, nq=Nq, nk=Nk,
        scale=1.0 / math.sqrt(dim_V),          # reference scales by 1/sqrt(dim_V)
        compute_dtype=compute_dtype,
        approx_recip=(jnp.dtype(compute_dtype) != jnp.dtype(jnp.float32)))

    out_p = pl.pallas_call(
        kernel,
        out_shape=jax.ShapeDtypeStruct((B, Nq, Dp), Q.dtype),
        grid=(B // Bt,),
        in_specs=[
            pl.BlockSpec((Bt, Nq, dim_Q), lambda i: (i, 0, 0)),
            pl.BlockSpec((Bt, Nk, dim_K), lambda i: (i, 0, 0)),
            pl.BlockSpec((dim_Q, Dp), lambda i: (0, 0)),
            pl.BlockSpec((1, Dp), lambda i: (0, 0)),
            pl.BlockSpec((dim_K, 2 * Dp), lambda i: (0, 0)),
            pl.BlockSpec((1, 2 * Dp), lambda i: (0, 0)),
            pl.BlockSpec((Dp, Dp), lambda i: (0, 0)),
            pl.BlockSpec((1, Dp), lambda i: (0, 0)),
        ],
        out_specs=pl.BlockSpec((Bt, Nq, Dp), lambda i: (i, 0, 0)),
        scratch_shapes=[pltpu.VMEM((Bt * Nq, Dp), jnp.float32)],
        compiler_params=pltpu.CompilerParams(
            dimension_semantics=("parallel",),
            vmem_limit_bytes=vmem_limit),
    )(Q, K, wq, bq, wkv, bkv, wo, bo)

    # De-pad is a contiguous tail slice (no-op when dim_V % 128 == 0).
    return out_p if Dp == dim_V else out_p[..., :dim_V]


def mab_reference(Q, K, params, *, num_heads):
    """Pure-JAX reference mirroring the PyTorch forward exactly."""
    dim_V = params["wq"].shape[1]
    Qp = Q @ params["wq"] + params["bq"]
    Kp = K @ params["wk"] + params["bk"]
    Vp = K @ params["wv"] + params["bv"]
    ds = dim_V // num_heads
    split = lambda X: jnp.concatenate(
        [X[..., h * ds:(h + 1) * ds] for h in range(num_heads)], axis=0)
    Q_, K_, V_ = split(Qp), split(Kp), split(Vp)
    A = jax.nn.softmax(jnp.einsum("bqd,bkd->bqk", Q_, K_) / math.sqrt(dim_V), axis=2)
    O_ = Q_ + jnp.einsum("bqk,bkd->bqd", A, V_)
    B = Q.shape[0]
    O = jnp.concatenate([O_[h * B:(h + 1) * B] for h in range(num_heads)], axis=2)
    O = O + jax.nn.relu(O @ params["wo"] + params["bo"])
    return O


def init_params(key, dim_Q, dim_K, dim_V):
    ks = jax.random.split(key, 8)

    def lin(kw, kb, fan_in, fan_out):
        bound = 1.0 / math.sqrt(fan_in)
        w = jax.random.uniform(kw, (fan_in, fan_out), jnp.float32, -bound, bound)
        b = jax.random.uniform(kb, (fan_out,), jnp.float32, -bound, bound)
        return w, b

    wq, bq = lin(ks[0], ks[1], dim_Q, dim_V)
    wk, bk = lin(ks[2], ks[3], dim_K, dim_V)
    wv, bv = lin(ks[4], ks[5], dim_K, dim_V)
    wo, bo = lin(ks[6], ks[7], dim_V, dim_V)
    return dict(wq=wq, bq=bq, wk=wk, bk=bk, wv=wv, bv=bv, wo=wo, bo=bo)


if __name__ == "__main__":
    def check(B, Nq, Nk, dim_Q, dim_K, dim_V, num_heads,
              compute_dtype, atol, rtol, label):
        key = jax.random.PRNGKey(0)
        kq, kk, kp = jax.random.split(key, 3)
        Q = jax.random.normal(kq, (B, Nq, dim_Q), jnp.float32)
        K = jax.random.normal(kk, (B, Nk, dim_K), jnp.float32)
        params = init_params(kp, dim_Q, dim_K, dim_V)
        ref = mab_reference(Q, K, params, num_heads=num_heads)
        out = jax.block_until_ready(
            mab_forward(Q, K, params, num_heads=num_heads,
                        compute_dtype=compute_dtype))
        assert out.shape == (B, Nq, dim_V), f"{label}: bad shape {out.shape}"
        assert jnp.allclose(out, ref, atol=atol, rtol=rtol), \
            f"{label}: mismatch vs reference"

    # f32 path, dim_V not a multiple of 128 (tail-padded lane-dense output).
    check(2, 8, 16, 32, 32, 32, 4, jnp.float32, 1e-4, 1e-4, "f32 padded")
    # bf16 MXU inputs (f32 accumulation), same shapes; looser tolerance.
    check(2, 8, 16, 32, 32, 32, 4, jnp.bfloat16, 1e-1, 1e-1, "bf16 padded")
    # f32 path, dim_V % 128 == 0 (no padding, Bt=2 / grid=2); tolerance allows
    # for XLA-vs-Mosaic f32 matmul precision differences at deeper contractions.
    check(4, 8, 8, 64, 64, 128, 4, jnp.float32, 2e-2, 2e-2, "f32 unpadded")

    print("KERNEL_OK")
</pallas_src>

<mosaic_0001>
module attributes {stable_mosaic.version = 11 : i64} {
  func.func @_mab_kernel(%arg0: i32, %arg1: memref<1x8x32xf32, #tpu.memory_space<vmem>>, %arg2: memref<1x16x32xf32, #tpu.memory_space<vmem>>, %arg3: memref<32x128xf32, #tpu.memory_space<vmem>>, %arg4: memref<1x128xf32, #tpu.memory_space<vmem>>, %arg5: memref<32x256xf32, #tpu.memory_space<vmem>>, %arg6: memref<1x256xf32, #tpu.memory_space<vmem>>, %arg7: memref<128x128xf32, #tpu.memory_space<vmem>>, %arg8: memref<1x128xf32, #tpu.memory_space<vmem>>, %arg9: memref<1x8x128xf32, #tpu.memory_space<vmem>>, %arg10: memref<8x128xf32, #tpu.memory_space<vmem>>) attributes {dimension_semantics = [#tpu.dimension_semantics<parallel>], iteration_bounds = array<i64: 2>, scalar_prefetch = 0 : i64, scratch_operands = 1 : i64, tpu.core_type = #tpu.core_type<tc>, window_params = [{transform_indices = @transform_0, window_bounds = array<i64: 1, 8, 32>}, {transform_indices = @transform_1, window_bounds = array<i64: 1, 16, 32>}, {pipeline_mode = #tpu.pipeline_mode<synchronous>, transform_indices = @transform_2, window_bounds = array<i64: 32, 128>}, {pipeline_mode = #tpu.pipeline_mode<synchronous>, transform_indices = @transform_3, window_bounds = array<i64: 1, 128>}, {pipeline_mode = #tpu.pipeline_mode<synchronous>, transform_indices = @transform_4, window_bounds = array<i64: 32, 256>}, {pipeline_mode = #tpu.pipeline_mode<synchronous>, transform_indices = @transform_5, window_bounds = array<i64: 1, 256>}, {pipeline_mode = #tpu.pipeline_mode<synchronous>, transform_indices = @transform_6, window_bounds = array<i64: 128, 128>}, {pipeline_mode = #tpu.pipeline_mode<synchronous>, transform_indices = @transform_7, window_bounds = array<i64: 1, 128>}, {transform_indices = @transform_8, window_bounds = array<i64: 1, 8, 128>}]} {
    %c0 = arith.constant 0 : index
    %c0_0 = arith.constant 0 : index
    %c0_1 = arith.constant 0 : index
    %0 = vector.load %arg1[%c0, %c0_0, %c0_1] : memref<1x8x32xf32, #tpu.memory_space<vmem>>, vector<1x8x32xf32>
    %1 = vector.shape_cast %0 : vector<1x8x32xf32> to vector<8x32xf32>
    %c0_2 = arith.constant 0 : index
    %c0_3 = arith.constant 0 : index
    %c0_4 = arith.constant 0 : index
    %2 = vector.load %arg2[%c0_2, %c0_3, %c0_4] : memref<1x16x32xf32, #tpu.memory_space<vmem>>, vector<1x16x32xf32>
    %3 = vector.shape_cast %2 : vector<1x16x32xf32> to vector<16x32xf32>
    %c0_5 = arith.constant 0 : index
    %c0_6 = arith.constant 0 : index
    %4 = vector.load %arg3[%c0_5, %c0_6] : memref<32x128xf32, #tpu.memory_space<vmem>>, vector<32x128xf32>
    %cst = arith.constant dense<0.000000e+00> : vector<8x128xf32>
    %5 = tpu.matmul %1, %4, %cst {dimension_numbers = #tpu.dot_dimension_numbers<[1], [0], [0], [1], [0, 0, 1, 1], [], []>} : vector<8x32xf32>, vector<32x128xf32>, vector<8x128xf32> -> vector<8x128xf32>
    %c0_7 = arith.constant 0 : index
    %c0_8 = arith.constant 0 : index
    %6 = vector.load %arg4[%c0_7, %c0_8] : memref<1x128xf32, #tpu.memory_space<vmem>>, vector<1x128xf32>
    %7 = vector.broadcast %6 : vector<1x128xf32> to vector<8x128xf32>
    %8 = arith.addf %5, %7 : vector<8x128xf32>
    %c0_9 = arith.constant 0 : index
    %c0_10 = arith.constant 0 : index
    %9 = vector.load %arg5[%c0_9, %c0_10] : memref<32x256xf32, #tpu.memory_space<vmem>>, vector<32x256xf32>
    %cst_11 = arith.constant dense<0.000000e+00> : vector<16x256xf32>
    %10 = tpu.matmul %3, %9, %cst_11 {dimension_numbers = #tpu.dot_dimension_numbers<[1], [0], [0], [1], [0, 0, 1, 1], [], []>} : vector<16x32xf32>, vector<32x256xf32>, vector<16x256xf32> -> vector<16x256xf32>
    %c0_12 = arith.constant 0 : index
    %c0_13 = arith.constant 0 : index
    %11 = vector.load %arg6[%c0_12, %c0_13] : memref<1x256xf32, #tpu.memory_space<vmem>>, vector<1x256xf32>
    %12 = vector.broadcast %11 : vector<1x256xf32> to vector<16x256xf32>
    %13 = arith.addf %10, %12 : vector<16x256xf32>
    %c0_14 = arith.constant 0 : index
    %c0_15 = arith.constant 0 : index
    %14 = vector.load %arg10[%c0_14, %c0_15] : memref<8x128xf32, #tpu.memory_space<vmem>>, vector<8x128xf32>
    tpu.vector_store %arg10[%c0_14, %c0_15], %8 {strides = array<i32>} : memref<8x128xf32, #tpu.memory_space<vmem>>, vector<8x128xf32>,
    %15 = vector.extract_strided_slice %8 {offsets = [0, 0], sizes = [8, 8], strides = [1, 1]} : vector<8x128xf32> to vector<8x8xf32>
    %16 = vector.shape_cast %15 : vector<8x8xf32> to vector<1x8x8xf32>
    %17 = vector.extract_strided_slice %13 {offsets = [0, 0], sizes = [16, 8], strides = [1, 1]} : vector<16x256xf32> to vector<16x8xf32>
    %18 = vector.shape_cast %17 : vector<16x8xf32> to vector<1x16x8xf32>
    %19 = vector.extract_strided_slice %13 {offsets = [0, 128], sizes = [16, 8], strides = [1, 1]} : vector<16x256xf32> to vector<16x8xf32>
    %20 = vector.shape_cast %19 : vector<16x8xf32> to vector<1x16x8xf32>
    "tpu.trace_start"() <{level = 10 : i32, message = "bqe,bke->bqk"}> : () -> ()
    %cst_16 = arith.constant dense<0.000000e+00> : vector<1x8x16xf32>
    %21 = tpu.matmul %16, %18, %cst_16 {dimension_numbers = #tpu.dot_dimension_numbers<[2], [2], [1], [1], [0, 0, 0, 1, 1, 1], [0], [0]>} : vector<1x8x8xf32>, vector<1x16x8xf32>, vector<1x8x16xf32> -> vector<1x8x16xf32>
    "tpu.trace_stop"() : () -> ()
    %cst_17 = arith.constant 0.176776692 : f32
    %22 = vector.broadcast %cst_17 : f32 to vector<1x8x16xf32>
    %23 = arith.mulf %21, %22 : vector<1x8x16xf32>
    %cst_18 = arith.constant dense<0xFF800000> : vector<1x8xf32>
    %24 = vector.multi_reduction <maximumf>, %23, %cst_18 [2] : vector<1x8x16xf32> to vector<1x8xf32>
    %25 = vector.shape_cast %24 : vector<1x8xf32> to vector<1x8x1xf32>
    %26 = vector.broadcast %25 : vector<1x8x1xf32> to vector<1x8x16xf32>
    %27 = arith.subf %23, %26 : vector<1x8x16xf32>
    %28 = math.exp %27 : vector<1x8x16xf32>
    %cst_19 = arith.constant dense<0.000000e+00> : vector<1x8xf32>
    %29 = vector.multi_reduction <add>, %28, %cst_19 [2] : vector<1x8x16xf32> to vector<1x8xf32>
    %30 = vector.shape_cast %29 : vector<1x8xf32> to vector<1x8x1xf32>
    %31 = tpu.reciprocal %30 : vector<1x8x1xf32> -> vector<1x8x1xf32>
    %32 = vector.broadcast %31 : vector<1x8x1xf32> to vector<1x8x16xf32>
    %33 = arith.mulf %28, %32 : vector<1x8x16xf32>
    "tpu.trace_start"() <{level = 10 : i32, message = "bqk,bke->bqe"}> : () -> ()
    %cst_20 = arith.constant dense<0.000000e+00> : vector<1x8x8xf32>
    %34 = tpu.matmul %33, %20, %cst_20 {dimension_numbers = #tpu.dot_dimension_numbers<[2], [1], [1], [2], [0, 0, 0, 1, 1, 2], [0], [0]>} : vector<1x8x16xf32>, vector<1x16x8xf32>, vector<1x8x8xf32> -> vector<1x8x8xf32>
    "tpu.trace_stop"() : () -> ()
    %35 = arith.addf %16, %34 : vector<1x8x8xf32>
    %36 = vector.shape_cast %35 : vector<1x8x8xf32> to vector<8x8xf32>
    %c0_21 = arith.constant 0 : index
    %c0_22 = arith.constant 0 : index
    %37 = vector.load %arg10[%c0_21, %c0_22] : memref<8x128xf32, #tpu.memory_space<vmem>>, vector<8x8xf32>
    tpu.vector_store %arg10[%c0_21, %c0_22], %36 {strides = array<i32>} : memref<8x128xf32, #tpu.memory_space<vmem>>, vector<8x8xf32>,
    %38 = vector.extract_strided_slice %8 {offsets = [0, 8], sizes = [8, 8], strides = [1, 1]} : vector<8x128xf32> to vector<8x8xf32>
    %39 = vector.shape_cast %38 : vector<8x8xf32> to vector<1x8x8xf32>
    %40 = vector.extract_strided_slice %13 {offsets = [0, 8], sizes = [16, 8], strides = [1, 1]} : vector<16x256xf32> to vector<16x8xf32>
    %41 = vector.shape_cast %40 : vector<16x8xf32> to vector<1x16x8xf32>
    %42 = vector.extract_strided_slice %13 {offsets = [0, 136], sizes = [16, 8], strides = [1, 1]} : vector<16x256xf32> to vector<16x8xf32>
    %43 = vector.shape_cast %42 : vector<16x8xf32> to vector<1x16x8xf32>
    "tpu.trace_start"() <{level = 10 : i32, message = "bqe,bke->bqk"}> : () -> ()
    %cst_23 = arith.constant dense<0.000000e+00> : vector<1x8x16xf32>
    %44 = tpu.matmul %39, %41, %cst_23 {dimension_numbers = #tpu.dot_dimension_numbers<[2], [2], [1], [1], [0, 0, 0, 1, 1, 1], [0], [0]>} : vector<1x8x8xf32>, vector<1x16x8xf32>, vector<1x8x16xf32> -> vector<1x8x16xf32>
    "tpu.trace_stop"() : () -> ()
    %cst_24 = arith.constant 0.176776692 : f32
    %45 = vector.broadcast %cst_24 : f32 to vector<1x8x16xf32>
    %46 = arith.mulf %44, %45 : vector<1x8x16xf32>
    %cst_25 = arith.constant dense<0xFF800000> : vector<1x8xf32>
    %47 = vector.multi_reduction <maximumf>, %46, %cst_25 [2] : vector<1x8x16xf32> to vector<1x8xf32>
    %48 = vector.shape_cast %47 : vector<1x8xf32> to vector<1x8x1xf32>
    %49 = vector.broadcast %48 : vector<1x8x1xf32> to vector<1x8x16xf32>
    %50 = arith.subf %46, %49 : vector<1x8x16xf32>
    %51 = math.exp %50 : vector<1x8x16xf32>
    %cst_26 = arith.constant dense<0.000000e+00> : vector<1x8xf32>
    %52 = vector.multi_reduction <add>, %51, %cst_26 [2] : vector<1x8x16xf32> to vector<1x8xf32>
    %53 = vector.shape_cast %52 : vector<1x8xf32> to vector<1x8x1xf32>
    %54 = tpu.reciprocal %53 : vector<1x8x1xf32> -> vector<1x8x1xf32>
    %55 = vector.broadcast %54 : vector<1x8x1xf32> to vector<1x8x16xf32>
    %56 = arith.mulf %51, %55 : vector<1x8x16xf32>
    "tpu.trace_start"() <{level = 10 : i32, message = "bqk,bke->bqe"}> : () -> ()
    %cst_27 = arith.constant dense<0.000000e+00> : vector<1x8x8xf32>
    %57 = tpu.matmul %56, %43, %cst_27 {dimension_numbers = #tpu.dot_dimension_numbers<[2], [1], [1], [2], [0, 0, 0, 1, 1, 2], [0], [0]>} : vector<1x8x16xf32>, vector<1x16x8xf32>, vector<1x8x8xf32> -> vector<1x8x8xf32>
    "tpu.trace_stop"() : () -> ()
    %58 = arith.addf %39, %57 : vector<1x8x8xf32>
    %59 = vector.shape_cast %58 : vector<1x8x8xf32> to vector<8x8xf32>
    %c0_28 = arith.constant 0 : index
    %c8 = arith.constant 8 : index
    %60 = vector.load %arg10[%c0_28, %c8] : memref<8x128xf32, #tpu.memory_space<vmem>>, vector<8x8xf32>
    tpu.vector_store %arg10[%c0_28, %c8], %59 {strides = array<i32>} : memref<8x128xf32, #tpu.memory_space<vmem>>, vector<8x8xf32>,
    %61 = vector.extract_strided_slice %8 {offsets = [0, 16], sizes = [8, 8], strides = [1, 1]} : vector<8x128xf32> to vector<8x8xf32>
    %62 = vector.shape_cast %61 : vector<8x8xf32> to vector<1x8x8xf32>
    %63 = vector.extract_strided_slice %13 {offsets = [0, 16], sizes = [16, 8], strides = [1, 1]} : vector<16x256xf32> to vector<16x8xf32>
    %64 = vector.shape_cast %63 : vector<16x8xf32> to vector<1x16x8xf32>
    %65 = vector.extract_strided_slice %13 {offsets = [0, 144], sizes = [16, 8], strides = [1, 1]} : vector<16x256xf32> to vector<16x8xf32>
    %66 = vector.shape_cast %65 : vector<16x8xf32> to vector<1x16x8xf32>
    "tpu.trace_start"() <{level = 10 : i32, message = "bqe,bke->bqk"}> : () -> ()
    %cst_29 = arith.constant dense<0.000000e+00> : vector<1x8x16xf32>
    %67 = tpu.matmul %62, %64, %cst_29 {dimension_numbers = #tpu.dot_dimension_numbers<[2], [2], [1], [1], [0, 0, 0, 1, 1, 1], [0], [0]>} : vector<1x8x8xf32>, vector<1x16x8xf32>, vector<1x8x16xf32> -> vector<1x8x16xf32>
    "tpu.trace_stop"() : () -> ()
    %cst_30 = arith.constant 0.176776692 : f32
    %68 = vector.broadcast %cst_30 : f32 to vector<1x8x16xf32>
    %69 = arith.mulf %67, %68 : vector<1x8x16xf32>
    %cst_31 = arith.constant dense<0xFF800000> : vector<1x8xf32>
    %70 = vector.multi_reduction <maximumf>, %69, %cst_31 [2] : vector<1x8x16xf32> to vector<1x8xf32>
    %71 = vector.shape_cast %70 : vector<1x8xf32> to vector<1x8x1xf32>
    %72 = vector.broadcast %71 : vector<1x8x1xf32> to vector<1x8x16xf32>
    %73 = arith.subf %69, %72 : vector<1x8x16xf32>
    %74 = math.exp %73 : vector<1x8x16xf32>
    %cst_32 = arith.constant dense<0.000000e+00> : vector<1x8xf32>
    %75 = vector.multi_reduction <add>, %74, %cst_32 [2] : vector<1x8x16xf32> to vector<1x8xf32>
    %76 = vector.shape_cast %75 : vector<1x8xf32> to vector<1x8x1xf32>
    %77 = tpu.reciprocal %76 : vector<1x8x1xf32> -> vector<1x8x1xf32>
    %78 = vector.broadcast %77 : vector<1x8x1xf32> to vector<1x8x16xf32>
    %79 = arith.mulf %74, %78 : vector<1x8x16xf32>
    "tpu.trace_start"() <{level = 10 : i32, message = "bqk,bke->bqe"}> : () -> ()
    %cst_33 = arith.constant dense<0.000000e+00> : vector<1x8x8xf32>
    %80 = tpu.matmul %79, %66, %cst_33 {dimension_numbers = #tpu.dot_dimension_numbers<[2], [1], [1], [2], [0, 0, 0, 1, 1, 2], [0], [0]>} : vector<1x8x16xf32>, vector<1x16x8xf32>, vector<1x8x8xf32> -> vector<1x8x8xf32>
    "tpu.trace_stop"() : () -> ()
    %81 = arith.addf %62, %80 : vector<1x8x8xf32>
    %82 = vector.shape_cast %81 : vector<1x8x8xf32> to vector<8x8xf32>
    %c0_34 = arith.constant 0 : index
    %c16 = arith.constant 16 : index
    %83 = vector.load %arg10[%c0_34, %c16] : memref<8x128xf32, #tpu.memory_space<vmem>>, vector<8x8xf32>
    tpu.vector_store %arg10[%c0_34, %c16], %82 {strides = array<i32>} : memref<8x128xf32, #tpu.memory_space<vmem>>, vector<8x8xf32>,
    %84 = vector.extract_strided_slice %8 {offsets = [0, 24], sizes = [8, 8], strides = [1, 1]} : vector<8x128xf32> to vector<8x8xf32>
    %85 = vector.shape_cast %84 : vector<8x8xf32> to vector<1x8x8xf32>
    %86 = vector.extract_strided_slice %13 {offsets = [0, 24], sizes = [16, 8], strides = [1, 1]} : vector<16x256xf32> to vector<16x8xf32>
    %87 = vector.shape_cast %86 : vector<16x8xf32> to vector<1x16x8xf32>
    %88 = vector.extract_strided_slice %13 {offsets = [0, 152], sizes = [16, 8], strides = [1, 1]} : vector<16x256xf32> to vector<16x8xf32>
    %89 = vector.shape_cast %88 : vector<16x8xf32> to vector<1x16x8xf32>
    "tpu.trace_start"() <{level = 10 : i32, message = "bqe,bke->bqk"}> : () -> ()
    %cst_35 = arith.constant dense<0.000000e+00> : vector<1x8x16xf32>
    %90 = tpu.matmul %85, %87, %cst_35 {dimension_numbers = #tpu.dot_dimension_numbers<[2], [2], [1], [1], [0, 0, 0, 1, 1, 1], [0], [0]>} : vector<1x8x8xf32>, vector<1x16x8xf32>, vector<1x8x16xf32> -> vector<1x8x16xf32>
    "tpu.trace_stop"() : () -> ()
    %cst_36 = arith.constant 0.176776692 : f32
    %91 = vector.broadcast %cst_36 : f32 to vector<1x8x16xf32>
    %92 = arith.mulf %90, %91 : vector<1x8x16xf32>
    %cst_37 = arith.constant dense<0xFF800000> : vector<1x8xf32>
    %93 = vector.multi_reduction <maximumf>, %92, %cst_37 [2] : vector<1x8x16xf32> to vector<1x8xf32>
    %94 = vector.shape_cast %93 : vector<1x8xf32> to vector<1x8x1xf32>
    %95 = vector.broadcast %94 : vector<1x8x1xf32> to vector<1x8x16xf32>
    %96 = arith.subf %92, %95 : vector<1x8x16xf32>
    %97 = math.exp %96 : vector<1x8x16xf32>
    %cst_38 = arith.constant dense<0.000000e+00> : vector<1x8xf32>
    %98 = vector.multi_reduction <add>, %97, %cst_38 [2] : vector<1x8x16xf32> to vector<1x8xf32>
    %99 = vector.shape_cast %98 : vector<1x8xf32> to vector<1x8x1xf32>
    %100 = tpu.reciprocal %99 : vector<1x8x1xf32> -> vector<1x8x1xf32>
    %101 = vector.broadcast %100 : vector<1x8x1xf32> to vector<1x8x16xf32>
    %102 = arith.mulf %97, %101 : vector<1x8x16xf32>
    "tpu.trace_start"() <{level = 10 : i32, message = "bqk,bke->bqe"}> : () -> ()
    %cst_39 = arith.constant dense<0.000000e+00> : vector<1x8x8xf32>
    %103 = tpu.matmul %102, %89, %cst_39 {dimension_numbers = #tpu.dot_dimension_numbers<[2], [1], [1], [2], [0, 0, 0, 1, 1, 2], [0], [0]>} : vector<1x8x16xf32>, vector<1x16x8xf32>, vector<1x8x8xf32> -> vector<1x8x8xf32>
    "tpu.trace_stop"() : () -> ()
    %104 = arith.addf %85, %103 : vector<1x8x8xf32>
    %105 = vector.shape_cast %104 : vector<1x8x8xf32> to vector<8x8xf32>
    %c0_40 = arith.constant 0 : index
    %c24 = arith.constant 24 : index
    %106 = vector.load %arg10[%c0_40, %c24] : memref<8x128xf32, #tpu.memory_space<vmem>>, vector<8x8xf32>
    tpu.vector_store %arg10[%c0_40, %c24], %105 {strides = array<i32>} : memref<8x128xf32, #tpu.memory_space<vmem>>, vector<8x8xf32>,
    %c0_41 = arith.constant 0 : index
    %c0_42 = arith.constant 0 : index
    %107 = vector.load %arg10[%c0_41, %c0_42] : memref<8x128xf32, #tpu.memory_space<vmem>>, vector<8x128xf32>
    %c0_43 = arith.constant 0 : index
    %c0_44 = arith.constant 0 : index
    %108 = vector.load %arg7[%c0_43, %c0_44] : memref<128x128xf32, #tpu.memory_space<vmem>>, vector<128x128xf32>
    %cst_45 = arith.constant dense<0.000000e+00> : vector<8x128xf32>
    %109 = tpu.matmul %107, %108, %cst_45 {dimension_numbers = #tpu.dot_dimension_numbers<[1], [0], [0], [1], [0, 0, 1, 1], [], []>} : vector<8x128xf32>, vector<128x128xf32>, vector<8x128xf32> -> vector<8x128xf32>
    %c0_46 = arith.constant 0 : index
    %c0_47 = arith.constant 0 : index
    %110 = vector.load %arg8[%c0_46, %c0_47] : memref<1x128xf32, #tpu.memory_space<vmem>>, vector<1x128xf32>
    %111 = vector.broadcast %110 : vector<1x128xf32> to vector<8x128xf32>
    %112 = arith.addf %109, %111 : vector<8x128xf32>
    %cst_48 = arith.constant 0.000000e+00 : f32
    %113 = vector.broadcast %cst_48 : f32 to vector<8x128xf32>
    %114 = arith.maximumf %112, %113 : vector<8x128xf32>
    %115 = arith.addf %107, %114 : vector<8x128xf32>
    %116 = vector.shape_cast %115 : vector<8x128xf32> to vector<1x8x128xf32>
    %c0_49 = arith.constant 0 : index
    %c0_50 = arith.constant 0 : index
    %c0_51 = arith.constant 0 : index
    %117 = vector.load %arg9[%c0_49, %c0_50, %c0_51] : memref<1x8x128xf32, #tpu.memory_space<vmem>>, vector<1x8x128xf32>
    tpu.vector_store %arg9[%c0_49, %c0_50, %c0_51], %116 {strides = array<i32>} : memref<1x8x128xf32, #tpu.memory_space<vmem>>, vector<1x8x128xf32>,
    return
  }
  func.func @transform_0(%arg0: i32) -> (i32, i32, i32) {
    %c0_i32 = arith.constant 0 : i32
    %c0_i32_0 = arith.constant 0 : i32
    %c0_i32_1 = arith.constant 0 : i32
    return %arg0, %c0_i32, %c0_i32_0 : i32, i32, i32
  }
  func.func @transform_1(%arg0: i32) -> (i32, i32, i32) {
    %c0_i32 = arith.constant 0 : i32
    %c0_i32_0 = arith.constant 0 : i32
    %c0_i32_1 = arith.constant 0 : i32
    return %arg0, %c0_i32, %c0_i32_0 : i32, i32, i32
  }
  func.func @transform_2(%arg0: i32) -> (i32, i32) {
    %c0_i32 = arith.constant 0 : i32
    %c0_i32_0 = arith.constant 0 : i32
    %c0_i32_1 = arith.constant 0 : i32
    return %c0_i32, %c0_i32_0 : i32, i32
  }
  func.func @transform_3(%arg0: i32) -> (i32, i32) {
    %c0_i32 = arith.constant 0 : i32
    %c0_i32_0 = arith.constant 0 : i32
    %c0_i32_1 = arith.constant 0 : i32
    return %c0_i32, %c0_i32_0 : i32, i32
  }
  func.func @transform_4(%arg0: i32) -> (i32, i32) {
    %c0_i32 = arith.constant 0 : i32
    %c0_i32_0 = arith.constant 0 : i32
    %c0_i32_1 = arith.constant 0 : i32
    return %c0_i32, %c0_i32_0 : i32, i32
  }
  func.func @transform_5(%arg0: i32) -> (i32, i32) {
    %c0_i32 = arith.constant 0 : i32
    %c0_i32_0 = arith.constant 0 : i32
    %c0_i32_1 = arith.constant 0 : i32
    return %c0_i32, %c0_i32_0 : i32, i32
  }
  func.func @transform_6(%arg0: i32) -> (i32, i32) {
    %c0_i32 = arith.constant 0 : i32
    %c0_i32_0 = arith.constant 0 : i32
    %c0_i32_1 = arith.constant 0 : i32
    return %c0_i32, %c0_i32_0 : i32, i32
  }
  func.func @transform_7(%arg0: i32) -> (i32, i32) {
    %c0_i32 = arith.constant 0 : i32
    %c0_i32_0 = arith.constant 0 : i32
    %c0_i32_1 = arith.constant 0 : i32
    return %c0_i32, %c0_i32_0 : i32, i32
  }
  func.func @transform_8(%arg0: i32) -> (i32, i32, i32) {
    %c0_i32 = arith.constant 0 : i32
    %c0_i32_0 = arith.constant 0 : i32
    %c0_i32_1 = arith.constant 0 : i32
    return %arg0, %c0_i32, %c0_i32_0 : i32, i32, i32
  }
}

</mosaic_0001>

<llo_original>
// kernel: tpu_custom_call.1
$region0: #{tpu_custom_call.1}
  #allocation0 [shape = 'u32[]', space=smem, size = 0x4, offset = 0x4, fixed_abs, tag = 'smem constant byte address 0x4 - core index']
  #allocation1 [shape = 'u32[144,128]{1,0:T(1,128)}', space=vmem, size = 0x12000, scoped, tag = 'internal scratch']
  #allocation2 [shape = 'f32[8,128]{1,0:T(8,128)}', space=vmem, size = 0x1000, scoped, tag = 'scratch operand']
  %s0 = inlined_call_operand.hbm [shape: f32[2,8,32], index: 0, kind: input, shape index: {}]
  %s1 = inlined_call_operand.hbm [shape: f32[2,16,32], index: 1, kind: input, shape index: {}]
  %s2 = inlined_call_operand.hbm [shape: f32[32,128], index: 2, kind: input, shape index: {}]
  %s3 = inlined_call_operand.vmem [shape: f32[1,128], index: 3, kind: input, shape index: {}]
  %s4 = inlined_call_operand.hbm [shape: f32[32,256], index: 4, kind: input, shape index: {}]
  %s5 = inlined_call_operand.vmem [shape: f32[1,256], index: 5, kind: input, shape index: {}]
  %s6 = inlined_call_operand.hbm [shape: f32[128,128], index: 6, kind: input, shape index: {}]
  %s7 = inlined_call_operand.vmem [shape: f32[1,128], index: 7, kind: input, shape index: {}]
  %s8 = inlined_call_operand.hbm [shape: f32[2,8,128], index: 8, kind: output, shape index: {}]
  %s9 = sld [smem:[#allocation0]]
  $region85: #{tpu_custom_call.1} parent=0
    _
  %s11 = ssub.s32 1, %s9
  %s12 = scalar_select 0, %s11, %s9
  $region1: #{tpu_custom_call.1} parent=0
    #allocation3 [shape = 'u8[8192]{0}', space=vmem, size = 0x2000, scoped, tag = 'input window, operand 0']
    #allocation4 [shape = 's32[2]{0}', space=sflag, size = 0x8, scoped, tag = 'scoped memory for tpu_custom_call.1']
    #allocation5 [shape = 's32[2]{0}', space=sflag, size = 0x8, scoped, tag = 'scoped memory for tpu_custom_call.1']
    #allocation6 [shape = 'u8[16384]{0}', space=vmem, size = 0x4000, scoped, tag = 'input window, operand 1']
    #allocation7 [shape = 's32[2]{0}', space=sflag, size = 0x8, scoped, tag = 'scoped memory for tpu_custom_call.1']
    #allocation8 [shape = 'u8[16384]{0}', space=vmem, size = 0x4000, scoped, tag = 'input window, operand 2, single buffered']
    #allocation9 [shape = 'u8[32768]{0}', space=vmem, size = 0x8000, scoped, tag = 'input window, operand 4, single buffered']
    #allocation10 [shape = 's32[1]{0}', space=sflag, size = 0x4, scoped, tag = 'scoped memory for tpu_custom_call.1']
    #allocation11 [shape = 'u8[65536]{0}', space=vmem, size = 0x10000, scoped, tag = 'input window, operand 6, single buffered']
    #allocation12 [shape = 'u8[8192]{0}', space=vmem, size = 0x2000, scoped, tag = 'output window, operand 0']
    %13 = vsyncpa [#allocation4], 0
    %s14 = scalar_lea.sflag [#allocation4], 1
    %15 = vsyncpa %s14, 0
    %16 = vsyncpa [#allocation7], 0
    %s17 = scalar_lea.sflag [#allocation7], 1
    %18 = vsyncpa %s17, 0
    %19 = vsyncpa [#allocation10], 0
    %20 = vsyncpa [#allocation5], 0
    %s21 = scalar_lea.sflag [#allocation5], 1
    %22 = vsyncpa %s21, 0
    loop: start=0, step=1, limit=4
    $region2: #{tpu_custom_call.1} parent=1 // loop_pre_header
      _
    $region3: #{tpu_custom_call.1} parent=1 // loop_header
      %s24 = sphi 0, %s28
      %p25 = scmp.ge.s32.totalorder %s24, 4
      %s34 = sphi 0, %s36
      %s37 = sphi 0, %s34
      %s38 = sphi 0, %s37
      %s54 = sphi 0, %s38
      %s60 = sphi 0, %s62
      %s63 = sphi 0, %s60
      %s64 = sphi 0, %s63
      %s80 = sphi 0, %s64
      %s84 = sphi 0, %s84
      %s86 = sphi 0, %s84
      %s87 = sphi 0, %s86
      %s101 = sphi 0, %s87
      %s105 = sphi 0, %s105
      %s107 = sphi 0, %s105
      %s108 = sphi 0, %s107
      %s122 = sphi 0, %s108
      %s126 = sphi 0, %s126
      %s128 = sphi 0, %s126
      %s129 = sphi 0, %s128
      %s143 = sphi 0, %s129
      %s147 = sphi 0, %s147
      %s149 = sphi 0, %s147
      %s150 = sphi 0, %s149
      %s164 = sphi 0, %s150
      %s168 = sphi 0, %s168
      %s170 = sphi 0, %s168
      %s171 = sphi 0, %s170
      %s185 = sphi 0, %s171
      %s189 = sphi 0, %s189
      %s191 = sphi 0, %s189
      %s192 = sphi 0, %s191
      %s206 = sphi 0, %s192
      %s212 = sphi 0, %s214
      %s215 = sphi 0, %s212
      %s216 = sphi 0, %s215
      %s232 = sphi 0, %s216
    $region4: #{tpu_custom_call.1} parent=1 // loop_header_branch
      %27 = sbr.rel (%p25) target = $region8
    $region5: #{tpu_custom_call.1} parent=1 // loop_body
      %s29 = ssub.s32 %s24, 1
      %s30 = ssub.s32 %s24, 2
      %s31 = sadd.s32 %s24, 1
      %s32 = ssub.s32 %s24, %s31
      %p33 = scmp.eq.s32.totalorder %s32, 0
      %s35 = sadd.s32 %s34, 1
      %s36 = scalar_select %p33, %s34, %s35
      %p39 = pneg %p33
      %p40 = scmp.eq.s32.totalorder %s24, 1
      %p41 = por %p39, %p40
      %p42 = scmp.ne.s32.totalorder %s34, %s37
      %p43 = scmp.eq.s32.totalorder %s24, 0
      %p44 = por %p42, %p43
      %p45 = scmp.ne.s32.totalorder %s34, %s37
      %p46 = scmp.eq.s32.totalorder %s29, 1
      %p47 = por %p45, %p46
      %p48 = scmp.ne.s32.totalorder %s37, %s38
      %p49 = scmp.eq.s32.totalorder %s29, 0
      %p50 = por %p48, %p49
      %p51 = scmp.ne.s32.totalorder %s37, %s38
      %p52 = scmp.eq.s32.totalorder %s30, 1
      %p53 = por %p51, %p52
      %p55 = scmp.ne.s32.totalorder %s38, %s54
      %p56 = scmp.eq.s32.totalorder %s30, 0
      %p57 = por %p55, %p56
      %s58 = ssub.s32 %s24, %s31
      %p59 = scmp.eq.s32.totalorder %s58, 0
      %s61 = sadd.s32 %s60, 1
      %s62 = scalar_select %p59, %s60, %s61
      %p65 = pneg %p59
      %p66 = scmp.eq.s32.totalorder %s24, 1
      %p67 = por %p65, %p66
      %p68 = scmp.ne.s32.totalorder %s60, %s63
      %p69 = scmp.eq.s32.totalorder %s24, 0
      %p70 = por %p68, %p69
      %p71 = scmp.ne.s32.totalorder %s60, %s63
      %p72 = scmp.eq.s32.totalorder %s29, 1
      %p73 = por %p71, %p72
      %p74 = scmp.ne.s32.totalorder %s63, %s64
      %p75 = scmp.eq.s32.totalorder %s29, 0
      %p76 = por %p74, %p75
      %p77 = scmp.ne.s32.totalorder %s63, %s64
      %p78 = scmp.eq.s32.totalorder %s30, 1
      %p79 = por %p77, %p78
      %p81 = scmp.ne.s32.totalorder %s64, %s80
      %p82 = scmp.eq.s32.totalorder %s30, 0
      %p83 = por %p81, %p82
      %s85 = sadd.s32 %s84, 1
      %p88 = scmp.eq.s32.totalorder %s24, 1
      %p89 = scmp.ne.s32.totalorder %s84, %s86
      %p90 = scmp.eq.s32.totalorder %s24, 0
      %p91 = por %p89, %p90
      %p92 = scmp.ne.s32.totalorder %s84, %s86
      %p93 = scmp.eq.s32.totalorder %s29, 1
      %p94 = por %p92, %p93
      %p95 = scmp.ne.s32.totalorder %s86, %s87
      %p96 = scmp.eq.s32.totalorder %s29, 0
      %p97 = por %p95, %p96
      %p98 = scmp.ne.s32.totalorder %s86, %s87
      %p99 = scmp.eq.s32.totalorder %s30, 1
      %p100 = por %p98, %p99
      %p102 = scmp.ne.s32.totalorder %s87, %s101
      %p103 = scmp.eq.s32.totalorder %s30, 0
      %p104 = por %p102, %p103
      %s106 = sadd.s32 %s105, 1
      %p109 = scmp.eq.s32.totalorder %s24, 1
      %p110 = scmp.ne.s32.totalorder %s105, %s107
      %p111 = scmp.eq.s32.totalorder %s24, 0
      %p112 = por %p110, %p111
      %p113 = scmp.ne.s32.totalorder %s105, %s107
      %p114 = scmp.eq.s32.totalorder %s29, 1
      %p115 = por %p113, %p114
      %p116 = scmp.ne.s32.totalorder %s107, %s108
      %p117 = scmp.eq.s32.totalorder %s29, 0
      %p118 = por %p116, %p117
      %p119 = scmp.ne.s32.totalorder %s107, %s108
      %p120 = scmp.eq.s32.totalorder %s30, 1
      %p121 = por %p119, %p120
      %p123 = scmp.ne.s32.totalorder %s108, %s122
      %p124 = scmp.eq.s32.totalorder %s30, 0
      %p125 = por %p123, %p124
      %s127 = sadd.s32 %s126, 1
      %p130 = scmp.eq.s32.totalorder %s24, 1
      %p131 = scmp.ne.s32.totalorder %s126, %s128
      %p132 = scmp.eq.s32.totalorder %s24, 0
      %p133 = por %p131, %p132
      %p134 = scmp.ne.s32.totalorder %s126, %s128
      %p135 = scmp.eq.s32.totalorder %s29, 1
      %p136 = por %p134, %p135
      %p137 = scmp.ne.s32.totalorder %s128, %s129
      %p138 = scmp.eq.s32.totalorder %s29, 0
      %p139 = por %p137, %p138
      %p140 = scmp.ne.s32.totalorder %s128, %s129
      %p141 = scmp.eq.s32.totalorder %s30, 1
      %p142 = por %p140, %p141
      %p144 = scmp.ne.s32.totalorder %s129, %s143
      %p145 = scmp.eq.s32.totalorder %s30, 0
      %p146 = por %p144, %p145
      %s148 = sadd.s32 %s147, 1
      %p151 = scmp.eq.s32.totalorder %s24, 1
      %p152 = scmp.ne.s32.totalorder %s147, %s149
      %p153 = scmp.eq.s32.totalorder %s24, 0
      %p154 = por %p152, %p153
      %p155 = scmp.ne.s32.totalorder %s147, %s149
      %p156 = scmp.eq.s32.totalorder %s29, 1
      %p157 = por %p155, %p156
      %p158 = scmp.ne.s32.totalorder %s149, %s150
      %p159 = scmp.eq.s32.totalorder %s29, 0
      %p160 = por %p158, %p159
      %p161 = scmp.ne.s32.totalorder %s149, %s150
      %p162 = scmp.eq.s32.totalorder %s30, 1
      %p163 = por %p161, %p162
      %p165 = scmp.ne.s32.totalorder %s150, %s164
      %p166 = scmp.eq.s32.totalorder %s30, 0
      %p167 = por %p165, %p166
      %s169 = sadd.s32 %s168, 1
      %p172 = scmp.eq.s32.totalorder %s24, 1
      %p173 = scmp.ne.s32.totalorder %s168, %s170
      %p174 = scmp.eq.s32.totalorder %s24, 0
      %p175 = por %p173, %p174
      %p176 = scmp.ne.s32.totalorder %s168, %s170
      %p177 = scmp.eq.s32.totalorder %s29, 1
      %p178 = por %p176, %p177
      %p179 = scmp.ne.s32.totalorder %s170, %s171
      %p180 = scmp.eq.s32.totalorder %s29, 0
      %p181 = por %p179, %p180
      %p182 = scmp.ne.s32.totalorder %s170, %s171
      %p183 = scmp.eq.s32.totalorder %s30, 1
      %p184 = por %p182, %p183
      %p186 = scmp.ne.s32.totalorder %s171, %s185
      %p187 = scmp.eq.s32.totalorder %s30, 0
      %p188 = por %p186, %p187
      %s190 = sadd.s32 %s189, 1
      %p193 = scmp.eq.s32.totalorder %s24, 1
      %p194 = scmp.ne.s32.totalorder %s189, %s191
      %p195 = scmp.eq.s32.totalorder %s24, 0
      %p196 = por %p194, %p195
      %p197 = scmp.ne.s32.totalorder %s189, %s191
      %p198 = scmp.eq.s32.totalorder %s29, 1
      %p199 = por %p197, %p198
      %p200 = scmp.ne.s32.totalorder %s191, %s192
      %p201 = scmp.eq.s32.totalorder %s29, 0
      %p202 = por %p200, %p201
      %p203 = scmp.ne.s32.totalorder %s191, %s192
      %p204 = scmp.eq.s32.totalorder %s30, 1
      %p205 = por %p203, %p204
      %p207 = scmp.ne.s32.totalorder %s192, %s206
      %p208 = scmp.eq.s32.totalorder %s30, 0
      %p209 = por %p207, %p208
      %s210 = ssub.s32 %s24, %s31
      %p211 = scmp.eq.s32.totalorder %s210, 0
      %s213 = sadd.s32 %s212, 1
      %s214 = scalar_select %p211, %s212, %s213
      %p217 = pneg %p211
      %p218 = scmp.eq.s32.totalorder %s24, 1
      %p219 = por %p217, %p218
      %p220 = scmp.ne.s32.totalorder %s212, %s215
      %p221 = scmp.eq.s32.totalorder %s24, 0
      %p222 = por %p220, %p221
      %p223 = scmp.ne.s32.totalorder %s212, %s215
      %p224 = scmp.eq.s32.totalorder %s29, 1
      %p225 = por %p223, %p224
      %p226 = scmp.ne.s32.totalorder %s215, %s216
      %p227 = scmp.eq.s32.totalorder %s29, 0
      %p228 = por %p226, %p227
      %p229 = scmp.ne.s32.totalorder %s215, %s216
      %p230 = scmp.eq.s32.totalorder %s30, 1
      %p231 = por %p229, %p230
      %p233 = scmp.ne.s32.totalorder %s216, %s232
      %p234 = scmp.eq.s32.totalorder %s30, 0
      %p235 = por %p233, %p234
      %p236 = scmp.le.s32.totalorder 1, %s24
      %p237 = scmp.lt.s32.totalorder %s24, 3
      %p238 = pnand %p236, %p237
      %p239 = pneg %p238
      // Predicated region
      $region9: #{tpu_custom_call.1} parent=5 // pred_check
        _
      $region10: #{tpu_custom_call.1} parent=5 // pred_check_branch
        %241 = sbr.rel (%p238) target = $region12
      $region11: #{tpu_custom_call.1} parent=5 // pred_region
        %s242 = ssub.s32 %s24, 1
        // Predicated region
        $region13: #{tpu_custom_call.1} parent=11 // pred_check
          %p243 = pneg %p97
        $region14: #{tpu_custom_call.1} parent=11 // pred_check_branch
          %245 = sbr.rel (%p243) target = $region16
        $region15: #{tpu_custom_call.1} parent=11 // pred_region
          %s247 = ssub.s32 512, 512
          %248 = vsyncadd [#allocation7], %s247
          %s249 = sshll.u32 [#allocation8], 4
          %s250 = int_to_ptr.vmem [resolvable:$true] %s249
          %255 = dma.hbm_to_vmem [thread:$0]  %s2, 512, %s250, [#allocation7], 128, 128, 8
        $region16: #{tpu_custom_call.1} parent=11 // pred_fallthru
          _
        // Predicated region
        $region17: #{tpu_custom_call.1} parent=11 // pred_check
          %p256 = pneg %p118
        $region18: #{tpu_custom_call.1} parent=11 // pred_check_branch
          %258 = sbr.rel (%p256) target = $region20
        $region19: #{tpu_custom_call.1} parent=11 // pred_region
          _
        $region20: #{tpu_custom_call.1} parent=11 // pred_fallthru
          _
        // Predicated region
        $region21: #{tpu_custom_call.1} parent=11 // pred_check
          %p259 = pneg %p139
        $region22: #{tpu_custom_call.1} parent=11 // pred_check_branch
          %261 = sbr.rel (%p259) target = $region24
        $region23: #{tpu_custom_call.1} parent=11 // pred_region
          %s263 = ssub.s32 1024, 1024
          %264 = vsyncadd [#allocation10], %s263
          %s265 = sshll.u32 [#allocation9], 4
          %s266 = int_to_ptr.vmem [resolvable:$true] %s265
          %271 = dma.hbm_to_vmem [thread:$0]  %s4, 1024, %s266, [#allocation10], 256, 256, 16
        $region24: #{tpu_custom_call.1} parent=11 // pred_fallthru
          _
        // Predicated region
        $region25: #{tpu_custom_call.1} parent=11 // pred_check
          %p272 = pneg %p160
        $region26: #{tpu_custom_call.1} parent=11 // pred_check_branch
          %274 = sbr.rel (%p272) target = $region28
        $region27: #{tpu_custom_call.1} parent=11 // pred_region
          _
        $region28: #{tpu_custom_call.1} parent=11 // pred_fallthru
          _
        // Predicated region
        $region29: #{tpu_custom_call.1} parent=11 // pred_check
          %p275 = pneg %p181
        $region30: #{tpu_custom_call.1} parent=11 // pred_check_branch
          %277 = sbr.rel (%p275) target = $region32
        $region31: #{tpu_custom_call.1} parent=11 // pred_region
          %s279 = ssub.s32 2048, 2048
          %280 = vsyncadd [#allocation10], %s279
          %s281 = sshll.u32 [#allocation11], 4
          %s282 = int_to_ptr.vmem [resolvable:$true] %s281
          %287 = dma.hbm_to_vmem [thread:$0]  %s6, 2048, %s282, [#allocation10], 128, 128, 8
        $region32: #{tpu_custom_call.1} parent=11 // pred_fallthru
          _
        // Predicated region
        $region33: #{tpu_custom_call.1} parent=11 // pred_check
          %p288 = pneg %p202
        $region34: #{tpu_custom_call.1} parent=11 // pred_check_branch
          %290 = sbr.rel (%p288) target = $region36
        $region35: #{tpu_custom_call.1} parent=11 // pred_region
          _
        $region36: #{tpu_custom_call.1} parent=11 // pred_fallthru
          _
      $region12: #{tpu_custom_call.1} parent=5 // pred_fallthru
        _
      %p291 = scmp.lt.s32.totalorder %s24, 2
      // Predicated region
      $region37: #{tpu_custom_call.1} parent=5 // pred_check
        %p292 = pneg %p291
      $region38: #{tpu_custom_call.1} parent=5 // pred_check_branch
        %294 = sbr.rel (%p292) target = $region40
      $region39: #{tpu_custom_call.1} parent=5 // pred_region
        // Predicated region
        $region41: #{tpu_custom_call.1} parent=39 // pred_check
          %p295 = pneg %p44
        $region42: #{tpu_custom_call.1} parent=39 // pred_check_branch
          %297 = sbr.rel (%p295) target = $region44
        $region43: #{tpu_custom_call.1} parent=39 // pred_region
          %s298 = sand.u32 %s34, 1
          %s299 = scalar_lea.sflag [#allocation4], %s298
          %s300 = sand.u32 %s34, 1
          %s301 = smul.addr %s300, 8
          %s302 = scalar_lea.vmem [#allocation3], %s301
          %s304 = ssub.s32 128, 128
          %305 = vsyncadd %s299, %s304
          %s306 = smul.addr %s24, 128
          %s307 = scalar_lea.hbm %s0, %s306
          %s309 = sshll.u32 %s302, 4
          %s310 = int_to_ptr.vmem [resolvable:$true] %s309
          %312 = dma.hbm_to_vmem [thread:$0]  %s307, 128, %s310, %s299
        $region44: #{tpu_custom_call.1} parent=39 // pred_fallthru
          _
        // Predicated region
        $region45: #{tpu_custom_call.1} parent=39 // pred_check
          %p313 = pneg %p70
        $region46: #{tpu_custom_call.1} parent=39 // pred_check_branch
          %315 = sbr.rel (%p313) target = $region48
        $region47: #{tpu_custom_call.1} parent=39 // pred_region
          %s316 = sand.u32 %s24, 1
          %s317 = scalar_lea.sflag [#allocation7], %s316
          %s318 = sand.u32 %s60, 1
          %s319 = smul.addr %s318, 16
          %s320 = scalar_lea.vmem [#allocation6], %s319
          %s322 = ssub.s32 256, 256
          %323 = vsyncadd %s317, %s322
          %s324 = smul.addr %s24, 2
          %s325 = smul.addr %s324, 128
          %s326 = scalar_lea.hbm %s1, %s325
          %s327 = sshll.u32 %s320, 4
          %s328 = int_to_ptr.vmem [resolvable:$true] %s327
          %333 = dma.hbm_to_vmem [thread:$0]  %s326, 256, %s328, %s317, 128, 128, 8
        $region48: #{tpu_custom_call.1} parent=39 // pred_fallthru
          _
      $region40: #{tpu_custom_call.1} parent=5 // pred_fallthru
        _
      %p334 = scmp.le.s32.totalorder 1, %s24
      %p335 = scmp.lt.s32.totalorder %s24, 3
      %p336 = pnand %p334, %p335
      %p337 = pneg %p336
      // Predicated region
      $region49: #{tpu_custom_call.1} parent=5 // pred_check
        _
      $region50: #{tpu_custom_call.1} parent=5 // pred_check_branch
        %339 = sbr.rel (%p336) target = $region52
      $region51: #{tpu_custom_call.1} parent=5 // pred_region
        %s340 = ssub.s32 %s24, 1
        %s341 = sand.u32 %s37, 1
        %s342 = scalar_lea.sflag [#allocation4], %s341
        %s343 = sand.u32 %s37, 1
        %s344 = smul.addr %s343, 8
        %s345 = scalar_lea.vmem [#allocation3], %s344
        // Predicated region
        $region53: #{tpu_custom_call.1} parent=51 // pred_check
          %p346 = pneg %p50
        $region54: #{tpu_custom_call.1} parent=51 // pred_check_branch
          %348 = sbr.rel (%p346) target = $region56
        $region55: #{tpu_custom_call.1} parent=51 // pred_region
          %349 = dma.done %s342, 128
        $region56: #{tpu_custom_call.1} parent=51 // pred_fallthru
          _
        %s350 = sand.u32 %s29, 1
        %s351 = scalar_lea.sflag [#allocation7], %s350
        %s352 = sand.u32 %s63, 1
        %s353 = smul.addr %s352, 16
        %s354 = scalar_lea.vmem [#allocation6], %s353
        // Predicated region
        $region57: #{tpu_custom_call.1} parent=51 // pred_check
          %p355 = pneg %p76
        $region58: #{tpu_custom_call.1} parent=51 // pred_check_branch
          %357 = sbr.rel (%p355) target = $region60
        $region59: #{tpu_custom_call.1} parent=51 // pred_region
          %358 = dma.done %s351, 256
        $region60: #{tpu_custom_call.1} parent=51 // pred_fallthru
          _
        // Predicated region
        $region61: #{tpu_custom_call.1} parent=51 // pred_check
          %p359 = pneg %p97
        $region62: #{tpu_custom_call.1} parent=51 // pred_check_branch
          %361 = sbr.rel (%p359) target = $region64
        $region63: #{tpu_custom_call.1} parent=51 // pred_region
          %362 = dma.done [#allocation7], 512
        $region64: #{tpu_custom_call.1} parent=51 // pred_fallthru
          _
        // Predicated region
        $region65: #{tpu_custom_call.1} parent=51 // pred_check
          %p363 = pneg %p139
        $region66: #{tpu_custom_call.1} parent=51 // pred_check_branch
          %365 = sbr.rel (%p363) target = $region68
        $region67: #{tpu_custom_call.1} parent=51 // pred_region
          %366 = dma.done [#allocation10], 1024
        $region68: #{tpu_custom_call.1} parent=51 // pred_fallthru
          _
        // Predicated region
        $region69: #{tpu_custom_call.1} parent=51 // pred_check
          %p367 = pneg %p181
        $region70: #{tpu_custom_call.1} parent=51 // pred_check_branch
          %369 = sbr.rel (%p367) target = $region72
        $region71: #{tpu_custom_call.1} parent=51 // pred_region
          %370 = dma.done [#allocation10], 2048
        $region72: #{tpu_custom_call.1} parent=51 // pred_fallthru
          _
        %s371 = sand.u32 %s37, 1
        %s372 = scalar_lea.sflag [#allocation4], %s371
        %s373 = sand.u32 %s37, 1
        %s374 = smul.addr %s373, 8
        %s375 = scalar_lea.vmem [#allocation3], %s374
        %p376 = pneg %p50
        %p377 = pneg %p47
        %s378 = sand.u32 %s29, 1
        %s379 = scalar_lea.sflag [#allocation7], %s378
        %s380 = sand.u32 %s63, 1
        %s381 = smul.addr %s380, 16
        %s382 = scalar_lea.vmem [#allocation6], %s381
        %p383 = pneg %p76
        %p384 = pneg %p73
        %p385 = pneg %p97
        %p386 = pneg %p94
        %p387 = pneg %p118
        %p388 = pneg %p115
        %p389 = pneg %p139
        %p390 = pneg %p136
        %p391 = pneg %p160
        %p392 = pneg %p157
        %p393 = pneg %p181
        %p394 = pneg %p178
        %p395 = pneg %p202
        %p396 = pneg %p199
        %p397 = pneg %p228
        %p398 = pneg %p225
        %s399 = sand.u32 %s215, 1
        %s400 = scalar_lea.sflag [#allocation5], %s399
        %s401 = sand.u32 %s215, 1
        %s402 = smul.addr %s401, 8
        %s403 = scalar_lea.vmem [#allocation12], %s402
        %v404 = vld [vmem:[%s345] sm:$0xff]
        %v405 = vld [vmem:[%s354] sm:$0xff]
        %v406 = vld [vmem:[%s354 + $0x8] sm:$0xff]
        %v407 = vld [vmem:[#allocation8] sm:$0xff]
        %v408 = vld [vmem:[#allocation8 + $0x8] sm:$0xff]
        %v409 = vld [vmem:[#allocation8 + $0x10] sm:$0xff]
        %v410 = vld [vmem:[#allocation8 + $0x18] sm:$0xff]
        %v411 = vld [vmem:[%s3] sm:$0x1]
        %v413 = vlaneseq
        %v414 = vshrl.u32 %v413, 7
        %v415 = vsub.s32 0, %v414
        %v416 = vrot.slane %v411, %v415
        %vm418 = vcmask 261120
        %v420 = vsel %vm418, %v404, 0
        %422 = vmatprep.subr.mxu0 0.0
        %423 = vmatpush1.msra.mxu0 %v407
        %424 = vmatprep.subr.mxu0 0.0
        %425 = vmatpush1.msra.mxu0 %v408
        %426 = vmatprep.subr.mxu0 0.0
        %427 = vmatpush1.msra.mxu0 %v409
        %428 = vmatprep.subr.mxu0 0.0
        %429 = vmatpush1.msra.mxu0 %v410
        %430 = vmatprep.subr.mxu0 0.0
        %431 = vmatpush1.msra.mxu0 0.0
        %432 = vmatprep.subr.mxu0 0.0
        %433 = vmatpush1.msra.mxu0 0.0
        %434 = vmatprep.subr.mxu0 0.0
        %435 = vmatpush1.msra.mxu0 0.0
        %436 = vmatprep.subr.mxu0 0.0
        %437 = vmatpush1.msra.mxu0 0.0
        %438 = vmatprep.subr.mxu0 0.0
        %439 = vmatpush1.msra.mxu0 0.0
        %440 = vmatprep.subr.mxu0 0.0
        %441 = vmatpush1.msra.mxu0 0.0
        %442 = vmatprep.subr.mxu0 0.0
        %443 = vmatpush1.msra.mxu0 0.0
        %444 = vmatprep.subr.mxu0 0.0
        %445 = vmatpush1.msra.mxu0 0.0
        %446 = vmatprep.subr.mxu0 0.0
        %447 = vmatpush1.msra.mxu0 0.0
        %448 = vmatprep.subr.mxu0 0.0
        %449 = vmatpush1.msra.mxu0 0.0
        %450 = vmatprep.subr.mxu0 0.0
        %451 = vmatpush1.msra.mxu0 0.0
        %452 = vmatprep.subr.mxu0 0.0
        %453 = vmatpush1.msra.mxu0 0.0
        %454 = vmatprep.subr.mxu0 0.0
        %455 = vmatpush1.msra.mxu0 0.0
        %456 = vmatprep.subr.mxu0 0.0
        %457 = vmatpush1.msra.mxu0 0.0
        %458 = vmatprep.subr.mxu0 0.0
        %459 = vmatpush1.msra.mxu0 0.0
        %460 = vmatprep.subr.mxu0 0.0
        %461 = vmatpush1.msra.mxu0 0.0
        %462 = vmatprep.subr.mxu0 0.0
        %463 = vmatpush1.msra.mxu0 0.0
        %464 = vmatprep.subr.mxu0 0.0
        %465 = vmatpush1.msra.mxu0 0.0
        %466 = vmatprep.subr.mxu0 0.0
        %467 = vmatpush1.msra.mxu0 0.0
        %468 = vmatprep.subr.mxu0 0.0
        %469 = vmatpush1.msra.mxu0 0.0
        %470 = vmatprep.subr.mxu0 0.0
        %471 = vmatpush1.msra.mxu0 0.0
        %472 = vmatprep.subr.mxu0 0.0
        %473 = vmatpush1.msra.mxu0 0.0
        %474 = vmatprep.subr.mxu0 0.0
        %475 = vmatpush1.msra.mxu0 0.0
        %476 = vmatprep.subr.mxu0 0.0
        %477 = vmatpush1.msra.mxu0 0.0
        %478 = vmatprep.subr.mxu0 0.0
        %479 = vmatpush1.msra.mxu0 0.0
        %480 = vmatprep.subr.mxu0 0.0
        %481 = vmatpush1.msra.mxu0 0.0
        %482 = vmatprep.subr.mxu0 0.0
        %483 = vmatpush1.msra.mxu0 0.0
        %484 = vmatprep.subr.mxu0 0.0
        %485 = vmatpush1.msra.mxu0 0.0
        %486 = vmatprep.mubr.f32.mxu0 0.0
        %487 = vmatmul.mubr.f32.gmra.mrb[0].mxu0 %v420
        %v488 = vpop.f32.mrb[0].mxu0
        %v489 = vadd.f32 %v416, %v488
        %v490 = vpop.f32.mrb[0].mxu0
        %491 = vdwg.mxu0
        %v492 = vld [vmem:[#allocation9] sm:$0xff]
        %v493 = vld [vmem:[#allocation9 + $0x8] sm:$0xff]
        %v494 = vld [vmem:[#allocation9 + $0x10] sm:$0xff]
        %v495 = vld [vmem:[#allocation9 + $0x18] sm:$0xff]
        %v496 = vld [vmem:[#allocation9 + $0x20] sm:$0xff]
        %v497 = vld [vmem:[#allocation9 + $0x28] sm:$0xff]
        %v498 = vld [vmem:[#allocation9 + $0x30] sm:$0xff]
        %v499 = vld [vmem:[#allocation9 + $0x38] sm:$0xff]
        %v500 = vld [vmem:[%s5] sm:$0x3]
        %v502 = vlaneseq
        %v503 = vshrl.u32 %v502, 7
        %v504 = vsub.s32 0, %v503
        %v505 = vrot.slane %v500, %v504
        %v506 = vlaneseq
        %v507 = vshrl.u32 %v506, 7
        %v508 = vsub.s32 1, %v507
        %v509 = vrot.slane %v500, %v508
        %v513 = vsel %vm418, %v405, 0
        %v516 = vsel %vm418, %v406, 0
        %518 = vmatprep.subr.mxu0 %v493
        %519 = vmatpush1.msra.mxu0 %v492
        %520 = vmatprep.subr.mxu0 %v495
        %521 = vmatpush1.msra.mxu0 %v494
        %522 = vmatprep.subr.mxu0 %v497
        %523 = vmatpush1.msra.mxu0 %v496
        %524 = vmatprep.subr.mxu0 %v499
        %525 = vmatpush1.msra.mxu0 %v498
        %526 = vmatprep.subr.mxu0 0.0
        %527 = vmatpush1.msra.mxu0 0.0
        %528 = vmatprep.subr.mxu0 0.0
        %529 = vmatpush1.msra.mxu0 0.0
        %530 = vmatprep.subr.mxu0 0.0
        %531 = vmatpush1.msra.mxu0 0.0
        %532 = vmatprep.subr.mxu0 0.0
        %533 = vmatpush1.msra.mxu0 0.0
        %534 = vmatprep.subr.mxu0 0.0
        %535 = vmatpush1.msra.mxu0 0.0
        %536 = vmatprep.subr.mxu0 0.0
        %537 = vmatpush1.msra.mxu0 0.0
        %538 = vmatprep.subr.mxu0 0.0
        %539 = vmatpush1.msra.mxu0 0.0
        %540 = vmatprep.subr.mxu0 0.0
        %541 = vmatpush1.msra.mxu0 0.0
        %542 = vmatprep.subr.mxu0 0.0
        %543 = vmatpush1.msra.mxu0 0.0
        %544 = vmatprep.subr.mxu0 0.0
        %545 = vmatpush1.msra.mxu0 0.0
        %546 = vmatprep.subr.mxu0 0.0
        %547 = vmatpush1.msra.mxu0 0.0
        %548 = vmatprep.subr.mxu0 0.0
        %549 = vmatpush1.msra.mxu0 0.0
        %550 = vmatprep.subr.mxu0 0.0
        %551 = vmatpush1.msra.mxu0 0.0
        %552 = vmatprep.subr.mxu0 0.0
        %553 = vmatpush1.msra.mxu0 0.0
        %554 = vmatprep.subr.mxu0 0.0
        %555 = vmatpush1.msra.mxu0 0.0
        %556 = vmatprep.subr.mxu0 0.0
        %557 = vmatpush1.msra.mxu0 0.0
        %558 = vmatprep.subr.mxu0 0.0
        %559 = vmatpush1.msra.mxu0 0.0
        %560 = vmatprep.subr.mxu0 0.0
        %561 = vmatpush1.msra.mxu0 0.0
        %562 = vmatprep.subr.mxu0 0.0
        %563 = vmatpush1.msra.mxu0 0.0
        %564 = vmatprep.subr.mxu0 0.0
        %565 = vmatpush1.msra.mxu0 0.0
        %566 = vmatprep.subr.mxu0 0.0
        %567 = vmatpush1.msra.mxu0 0.0
        %568 = vmatprep.subr.mxu0 0.0
        %569 = vmatpush1.msra.mxu0 0.0
        %570 = vmatprep.subr.mxu0 0.0
        %571 = vmatpush1.msra.mxu0 0.0
        %572 = vmatprep.subr.mxu0 0.0
        %573 = vmatpush1.msra.mxu0 0.0
        %574 = vmatprep.subr.mxu0 0.0
        %575 = vmatpush1.msra.mxu0 0.0
        %576 = vmatprep.subr.mxu0 0.0
        %577 = vmatpush1.msra.mxu0 0.0
        %578 = vmatprep.subr.mxu0 0.0
        %579 = vmatpush1.msra.mxu0 0.0
        %580 = vmatprep.subr.mxu0 0.0
        %581 = vmatpush1.msra.mxu0 0.0
        %582 = vmatprep.mubr.f32.mxu0 0.0
        %583 = vmatmul.mubr.f32.gmra.mrb[0].mxu0 %v513
        %v584 = vpop.f32.mrb[0].mxu0
        %v585 = vadd.f32 %v505, %v584
        %v586 = vpop.f32.mrb[0].mxu0
        %v587 = vadd.f32 %v509, %v586
        %588 = vmatprep.mubr.f32.mxu0 0.0
        %589 = vmatmul.mubr.f32.gmra.mrb[0].mxu0 %v516
        %v590 = vpop.f32.mrb[0].mxu0
        %v591 = vadd.f32 %v505, %v590
        %v592 = vpop.f32.mrb[0].mxu0
        %v593 = vadd.f32 %v509, %v592
        %594 = vdwg.mxu0
        %595 = vst [vmem:[#allocation2] sm:$0xff] %v489
        %vm596 = vcmask 64512
        %v598 = vsel %vm596, %v489, 0
        %v601 = vsel %vm596, %v585, 0
        %v604 = vsel %vm596, %v591, 0
        %606 = vmatprep.subr.mxu0 0.0
        %607 = vmatpush1.xpose.msra.mxu0 %v601
        %608 = vmatprep.subr.mxu0 0.0
        %609 = vmatpush1.xpose.msra.mxu0 %v604
        %610 = vmatprep.subr.mxu0 0.0
        %611 = vmatpush1.xpose.msra.mxu0 0.0
        %612 = vmatprep.subr.mxu0 0.0
        %613 = vmatpush1.xpose.msra.mxu0 0.0
        %614 = vmatprep.subr.mxu0 0.0
        %615 = vmatpush1.xpose.msra.mxu0 0.0
        %616 = vmatprep.subr.mxu0 0.0
        %617 = vmatpush1.xpose.msra.mxu0 0.0
        %618 = vmatprep.subr.mxu0 0.0
        %619 = vmatpush1.xpose.msra.mxu0 0.0
        %620 = vmatprep.subr.mxu0 0.0
        %621 = vmatpush1.xpose.msra.mxu0 0.0
        %622 = vmatprep.subr.mxu0 0.0
        %623 = vmatpush1.xpose.msra.mxu0 0.0
        %624 = vmatprep.subr.mxu0 0.0
        %625 = vmatpush1.xpose.msra.mxu0 0.0
        %626 = vmatprep.subr.mxu0 0.0
        %627 = vmatpush1.xpose.msra.mxu0 0.0
        %628 = vmatprep.subr.mxu0 0.0
        %629 = vmatpush1.xpose.msra.mxu0 0.0
        %630 = vmatprep.subr.mxu0 0.0
        %631 = vmatpush1.xpose.msra.mxu0 0.0
        %632 = vmatprep.subr.mxu0 0.0
        %633 = vmatpush1.xpose.msra.mxu0 0.0
        %634 = vmatprep.subr.mxu0 0.0
        %635 = vmatpush1.xpose.msra.mxu0 0.0
        %636 = vmatprep.subr.mxu0 0.0
        %637 = vmatpush1.xpose.msra.mxu0 0.0
        %638 = vmatprep.subr.mxu0 0.0
        %639 = vmatpush1.xpose.msra.mxu0 0.0
        %640 = vmatprep.subr.mxu0 0.0
        %641 = vmatpush1.xpose.msra.mxu0 0.0
        %642 = vmatprep.subr.mxu0 0.0
        %643 = vmatpush1.xpose.msra.mxu0 0.0
        %644 = vmatprep.subr.mxu0 0.0
        %645 = vmatpush1.xpose.msra.mxu0 0.0
        %646 = vmatprep.subr.mxu0 0.0
        %647 = vmatpush1.xpose.msra.mxu0 0.0
        %648 = vmatprep.subr.mxu0 0.0
        %649 = vmatpush1.xpose.msra.mxu0 0.0
        %650 = vmatprep.subr.mxu0 0.0
        %651 = vmatpush1.xpose.msra.mxu0 0.0
        %652 = vmatprep.subr.mxu0 0.0
        %653 = vmatpush1.xpose.msra.mxu0 0.0
        %654 = vmatprep.subr.mxu0 0.0
        %655 = vmatpush1.xpose.msra.mxu0 0.0
        %656 = vmatprep.subr.mxu0 0.0
        %657 = vmatpush1.xpose.msra.mxu0 0.0
        %658 = vmatprep.subr.mxu0 0.0
        %659 = vmatpush1.xpose.msra.mxu0 0.0
        %660 = vmatprep.subr.mxu0 0.0
        %661 = vmatpush1.xpose.msra.mxu0 0.0
        %662 = vmatprep.subr.mxu0 0.0
        %663 = vmatpush1.xpose.msra.mxu0 0.0
        %664 = vmatprep.subr.mxu0 0.0
        %665 = vmatpush1.xpose.msra.mxu0 0.0
        %666 = vmatprep.subr.mxu0 0.0
        %667 = vmatpush1.xpose.msra.mxu0 0.0
        %668 = vmatprep.subr.mxu0 0.0
        %669 = vmatpush1.xpose.msra.mxu0 0.0
        %670 = vmatprep.mubr.f32.mxu0 0.0
        %671 = vmatmul.mubr.f32.gmra.mrb[0].mxu0 %v598
        %v672 = vpop.f32.mrb[0].mxu0
        %v673 = vadd.f32 0.0, %v672
        %v674 = vpop.f32.mrb[0].mxu0
        %675 = vdwg.mxu0
        %v676 = vmul.f32 %v673, 0.17677669
        %vm677 = vcmask 130048
        %v678 = vsel %vm677, %v676, -inf
        %679 = vmax.xlane.f32.xlu0 %v678
        %v680 = vpop.xlane.xlu0 %679
        %v681 = vsub.f32 %v676, %v680
        %v682 = vmul.f32 %v681, 1.442695
        %v683 = vpow.pop %v682
        %v684 = vsel %vm677, %v683, 0.0
        %685 = vadd.xlane.f32.xlu0 %v684
        %v686 = vpop.xlane.xlu0 %685
        %v687 = vrcp.pop %v686
        %v688 = vmul.f32 %v683, %v687
        %v690 = vsel %vm677, %v688, 0
        %692 = vmatprep.subr.mxu0 0.0
        %693 = vmatpush1.msra.mxu0 %v587
        %694 = vmatprep.subr.mxu0 0.0
        %695 = vmatpush1.msra.mxu0 %v593
        %696 = vmatprep.subr.mxu0 0.0
        %697 = vmatpush1.msra.mxu0 0.0
        %698 = vmatprep.subr.mxu0 0.0
        %699 = vmatpush1.msra.mxu0 0.0
        %700 = vmatprep.subr.mxu0 0.0
        %701 = vmatpush1.msra.mxu0 0.0
        %702 = vmatprep.subr.mxu0 0.0
        %703 = vmatpush1.msra.mxu0 0.0
        %704 = vmatprep.subr.mxu0 0.0
        %705 = vmatpush1.msra.mxu0 0.0
        %706 = vmatprep.subr.mxu0 0.0
        %707 = vmatpush1.msra.mxu0 0.0
        %708 = vmatprep.subr.mxu0 0.0
        %709 = vmatpush1.msra.mxu0 0.0
        %710 = vmatprep.subr.mxu0 0.0
        %711 = vmatpush1.msra.mxu0 0.0
        %712 = vmatprep.subr.mxu0 0.0
        %713 = vmatpush1.msra.mxu0 0.0
        %714 = vmatprep.subr.mxu0 0.0
        %715 = vmatpush1.msra.mxu0 0.0
        %716 = vmatprep.subr.mxu0 0.0
        %717 = vmatpush1.msra.mxu0 0.0
        %718 = vmatprep.subr.mxu0 0.0
        %719 = vmatpush1.msra.mxu0 0.0
        %720 = vmatprep.subr.mxu0 0.0
        %721 = vmatpush1.msra.mxu0 0.0
        %722 = vmatprep.subr.mxu0 0.0
        %723 = vmatpush1.msra.mxu0 0.0
        %724 = vmatprep.subr.mxu0 0.0
        %725 = vmatpush1.msra.mxu0 0.0
        %726 = vmatprep.subr.mxu0 0.0
        %727 = vmatpush1.msra.mxu0 0.0
        %728 = vmatprep.subr.mxu0 0.0
        %729 = vmatpush1.msra.mxu0 0.0
        %730 = vmatprep.subr.mxu0 0.0
        %731 = vmatpush1.msra.mxu0 0.0
        %732 = vmatprep.subr.mxu0 0.0
        %733 = vmatpush1.msra.mxu0 0.0
        %734 = vmatprep.subr.mxu0 0.0
        %735 = vmatpush1.msra.mxu0 0.0
        %736 = vmatprep.subr.mxu0 0.0
        %737 = vmatpush1.msra.mxu0 0.0
        %738 = vmatprep.subr.mxu0 0.0
        %739 = vmatpush1.msra.mxu0 0.0
        %740 = vmatprep.subr.mxu0 0.0
        %741 = vmatpush1.msra.mxu0 0.0
        %742 = vmatprep.subr.mxu0 0.0
        %743 = vmatpush1.msra.mxu0 0.0
        %744 = vmatprep.subr.mxu0 0.0
        %745 = vmatpush1.msra.mxu0 0.0
        %746 = vmatprep.subr.mxu0 0.0
        %747 = vmatpush1.msra.mxu0 0.0
        %748 = vmatprep.subr.mxu0 0.0
        %749 = vmatpush1.msra.mxu0 0.0
        %750 = vmatprep.subr.mxu0 0.0
        %751 = vmatpush1.msra.mxu0 0.0
        %752 = vmatprep.subr.mxu0 0.0
        %753 = vmatpush1.msra.mxu0 0.0
        %754 = vmatprep.subr.mxu0 0.0
        %755 = vmatpush1.msra.mxu0 0.0
        %756 = vmatprep.mubr.f32.mxu0 0.0
        %757 = vmatmul.mubr.f32.gmra.mrb[0].mxu0 %v690
        %v758 = vpop.f32.mrb[0].mxu0
        %v759 = vadd.f32 0.0, %v758
        %v760 = vpop.f32.mrb[0].mxu0
        %761 = vdwg.mxu0
        %v762 = vadd.f32 %v489, %v759
        %763 = vst.msk [vmem:[#allocation2] sm:$0xff] %vm596, %v762
        %764 = vrot.lane.b32.xlu0 %v489, 120
        %v765 = vpop.permute.xlu0 %764
        %766 = vrot.lane.b32.xlu0 %v585, 120
        %v767 = vpop.permute.xlu0 %766
        %768 = vrot.lane.b32.xlu0 %v591, 120
        %v769 = vpop.permute.xlu0 %768
        %v770 = vsel %vm596, %v765, 0
        %v772 = vsel %vm596, %v767, 0
        %v774 = vsel %vm596, %v769, 0
        %776 = vmatprep.subr.mxu0 0.0
        %777 = vmatpush1.xpose.msra.mxu0 %v772
        %778 = vmatprep.subr.mxu0 0.0
        %779 = vmatpush1.xpose.msra.mxu0 %v774
        %780 = vmatprep.subr.mxu0 0.0
        %781 = vmatpush1.xpose.msra.mxu0 0.0
        %782 = vmatprep.subr.mxu0 0.0
        %783 = vmatpush1.xpose.msra.mxu0 0.0
        %784 = vmatprep.subr.mxu0 0.0
        %785 = vmatpush1.xpose.msra.mxu0 0.0
        %786 = vmatprep.subr.mxu0 0.0
        %787 = vmatpush1.xpose.msra.mxu0 0.0
        %788 = vmatprep.subr.mxu0 0.0
        %789 = vmatpush1.xpose.msra.mxu0 0.0
        %790 = vmatprep.subr.mxu0 0.0
        %791 = vmatpush1.xpose.msra.mxu0 0.0
        %792 = vmatprep.subr.mxu0 0.0
        %793 = vmatpush1.xpose.msra.mxu0 0.0
        %794 = vmatprep.subr.mxu0 0.0
        %795 = vmatpush1.xpose.msra.mxu0 0.0
        %796 = vmatprep.subr.mxu0 0.0
        %797 = vmatpush1.xpose.msra.mxu0 0.0
        %798 = vmatprep.subr.mxu0 0.0
        %799 = vmatpush1.xpose.msra.mxu0 0.0
        %800 = vmatprep.subr.mxu0 0.0
        %801 = vmatpush1.xpose.msra.mxu0 0.0
        %802 = vmatprep.subr.mxu0 0.0
        %803 = vmatpush1.xpose.msra.mxu0 0.0
        %804 = vmatprep.subr.mxu0 0.0
        %805 = vmatpush1.xpose.msra.mxu0 0.0
        %806 = vmatprep.subr.mxu0 0.0
        %807 = vmatpush1.xpose.msra.mxu0 0.0
        %808 = vmatprep.subr.mxu0 0.0
        %809 = vmatpush1.xpose.msra.mxu0 0.0
        %810 = vmatprep.subr.mxu0 0.0
        %811 = vmatpush1.xpose.msra.mxu0 0.0
        %812 = vmatprep.subr.mxu0 0.0
        %813 = vmatpush1.xpose.msra.mxu0 0.0
        %814 = vmatprep.subr.mxu0 0.0
        %815 = vmatpush1.xpose.msra.mxu0 0.0
        %816 = vmatprep.subr.mxu0 0.0
        %817 = vmatpush1.xpose.msra.mxu0 0.0
        %818 = vmatprep.subr.mxu0 0.0
        %819 = vmatpush1.xpose.msra.mxu0 0.0
        %820 = vmatprep.subr.mxu0 0.0
        %821 = vmatpush1.xpose.msra.mxu0 0.0
        %822 = vmatprep.subr.mxu0 0.0
        %823 = vmatpush1.xpose.msra.mxu0 0.0
        %824 = vmatprep.subr.mxu0 0.0
        %825 = vmatpush1.xpose.msra.mxu0 0.0
        %826 = vmatprep.subr.mxu0 0.0
        %827 = vmatpush1.xpose.msra.mxu0 0.0
        %828 = vmatprep.subr.mxu0 0.0
        %829 = vmatpush1.xpose.msra.mxu0 0.0
        %830 = vmatprep.subr.mxu0 0.0
        %831 = vmatpush1.xpose.msra.mxu0 0.0
        %832 = vmatprep.subr.mxu0 0.0
        %833 = vmatpush1.xpose.msra.mxu0 0.0
        %834 = vmatprep.subr.mxu0 0.0
        %835 = vmatpush1.xpose.msra.mxu0 0.0
        %836 = vmatprep.subr.mxu0 0.0
        %837 = vmatpush1.xpose.msra.mxu0 0.0
        %838 = vmatprep.subr.mxu0 0.0
        %839 = vmatpush1.xpose.msra.mxu0 0.0
        %840 = vmatprep.mubr.f32.mxu0 0.0
        %841 = vmatmul.mubr.f32.gmra.mrb[0].mxu0 %v770
        %v842 = vpop.f32.mrb[0].mxu0
        %v843 = vadd.f32 0.0, %v842
        %v844 = vpop.f32.mrb[0].mxu0
        %845 = vdwg.mxu0
        %v846 = vmul.f32 %v843, 0.17677669
        %v847 = vsel %vm677, %v846, -inf
        %848 = vmax.xlane.f32.xlu0 %v847
        %v849 = vpop.xlane.xlu0 %848
        %v850 = vsub.f32 %v846, %v849
        %v851 = vmul.f32 %v850, 1.442695
        %v852 = vpow.pop %v851
        %v853 = vsel %vm677, %v852, 0.0
        %854 = vadd.xlane.f32.xlu0 %v853
        %v855 = vpop.xlane.xlu0 %854
        %v856 = vrcp.pop %v855
        %v857 = vmul.f32 %v852, %v856
        %860 = vrot.lane.b32.xlu0 %v587, 120
        %v861 = vpop.permute.xlu0 %860
        %862 = vrot.lane.b32.xlu0 %v593, 120
        %v863 = vpop.permute.xlu0 %862
        %v867 = vsel %vm677, %v857, 0
        %869 = vmatprep.subr.mxu0 0.0
        %870 = vmatpush1.msra.mxu0 %v861
        %871 = vmatprep.subr.mxu0 0.0
        %872 = vmatpush1.msra.mxu0 %v863
        %873 = vmatprep.subr.mxu0 0.0
        %874 = vmatpush1.msra.mxu0 0.0
        %875 = vmatprep.subr.mxu0 0.0
        %876 = vmatpush1.msra.mxu0 0.0
        %877 = vmatprep.subr.mxu0 0.0
        %878 = vmatpush1.msra.mxu0 0.0
        %879 = vmatprep.subr.mxu0 0.0
        %880 = vmatpush1.msra.mxu0 0.0
        %881 = vmatprep.subr.mxu0 0.0
        %882 = vmatpush1.msra.mxu0 0.0
        %883 = vmatprep.subr.mxu0 0.0
        %884 = vmatpush1.msra.mxu0 0.0
        %885 = vmatprep.subr.mxu0 0.0
        %886 = vmatpush1.msra.mxu0 0.0
        %887 = vmatprep.subr.mxu0 0.0
        %888 = vmatpush1.msra.mxu0 0.0
        %889 = vmatprep.subr.mxu0 0.0
        %890 = vmatpush1.msra.mxu0 0.0
        %891 = vmatprep.subr.mxu0 0.0
        %892 = vmatpush1.msra.mxu0 0.0
        %893 = vmatprep.subr.mxu0 0.0
        %894 = vmatpush1.msra.mxu0 0.0
        %895 = vmatprep.subr.mxu0 0.0
        %896 = vmatpush1.msra.mxu0 0.0
        %897 = vmatprep.subr.mxu0 0.0
        %898 = vmatpush1.msra.mxu0 0.0
        %899 = vmatprep.subr.mxu0 0.0
        %900 = vmatpush1.msra.mxu0 0.0
        %901 = vmatprep.subr.mxu0 0.0
        %902 = vmatpush1.msra.mxu0 0.0
        %903 = vmatprep.subr.mxu0 0.0
        %904 = vmatpush1.msra.mxu0 0.0
        %905 = vmatprep.subr.mxu0 0.0
        %906 = vmatpush1.msra.mxu0 0.0
        %907 = vmatprep.subr.mxu0 0.0
        %908 = vmatpush1.msra.mxu0 0.0
        %909 = vmatprep.subr.mxu0 0.0
        %910 = vmatpush1.msra.mxu0 0.0
        %911 = vmatprep.subr.mxu0 0.0
        %912 = vmatpush1.msra.mxu0 0.0
        %913 = vmatprep.subr.mxu0 0.0
        %914 = vmatpush1.msra.mxu0 0.0
        %915 = vmatprep.subr.mxu0 0.0
        %916 = vmatpush1.msra.mxu0 0.0
        %917 = vmatprep.subr.mxu0 0.0
        %918 = vmatpush1.msra.mxu0 0.0
        %919 = vmatprep.subr.mxu0 0.0
        %920 = vmatpush1.msra.mxu0 0.0
        %921 = vmatprep.subr.mxu0 0.0
        %922 = vmatpush1.msra.mxu0 0.0
        %923 = vmatprep.subr.mxu0 0.0
        %924 = vmatpush1.msra.mxu0 0.0
        %925 = vmatprep.subr.mxu0 0.0
        %926 = vmatpush1.msra.mxu0 0.0
        %927 = vmatprep.subr.mxu0 0.0
        %928 = vmatpush1.msra.mxu0 0.0
        %929 = vmatprep.subr.mxu0 0.0
        %930 = vmatpush1.msra.mxu0 0.0
        %931 = vmatprep.subr.mxu0 0.0
        %932 = vmatpush1.msra.mxu0 0.0
        %933 = vmatprep.mubr.f32.mxu0 0.0
        %934 = vmatmul.mubr.f32.gmra.mrb[0].mxu0 %v867
        %v935 = vpop.f32.mrb[0].mxu0
        %v936 = vadd.f32 0.0, %v935
        %v937 = vpop.f32.mrb[0].mxu0
        %938 = vdwg.mxu0
        %940 = vrot.lane.b32.xlu0 %v936, 8
        %v941 = vpop.permute.xlu0 %940
        %v943 = vadd.f32 %v489, %v941
        %vm944 = vcmask 130112
        %945 = vst.msk [vmem:[#allocation2] sm:$0xff] %vm944, %v943
        %946 = vrot.lane.b32.xlu0 %v489, 112
        %v947 = vpop.permute.xlu0 %946
        %948 = vrot.lane.b32.xlu0 %v585, 112
        %v949 = vpop.permute.xlu0 %948
        %950 = vrot.lane.b32.xlu0 %v591, 112
        %v951 = vpop.permute.xlu0 %950
        %v952 = vsel %vm596, %v947, 0
        %v954 = vsel %vm596, %v949, 0
        %v956 = vsel %vm596, %v951, 0
        %958 = vmatprep.subr.mxu0 0.0
        %959 = vmatpush1.xpose.msra.mxu0 %v954
        %960 = vmatprep.subr.mxu0 0.0
        %961 = vmatpush1.xpose.msra.mxu0 %v956
        %962 = vmatprep.subr.mxu0 0.0
        %963 = vmatpush1.xpose.msra.mxu0 0.0
        %964 = vmatprep.subr.mxu0 0.0
        %965 = vmatpush1.xpose.msra.mxu0 0.0
        %966 = vmatprep.subr.mxu0 0.0
        %967 = vmatpush1.xpose.msra.mxu0 0.0
        %968 = vmatprep.subr.mxu0 0.0
        %969 = vmatpush1.xpose.msra.mxu0 0.0
        %970 = vmatprep.subr.mxu0 0.0
        %971 = vmatpush1.xpose.msra.mxu0 0.0
        %972 = vmatprep.subr.mxu0 0.0
        %973 = vmatpush1.xpose.msra.mxu0 0.0
        %974 = vmatprep.subr.mxu0 0.0
        %975 = vmatpush1.xpose.msra.mxu0 0.0
        %976 = vmatprep.subr.mxu0 0.0
        %977 = vmatpush1.xpose.msra.mxu0 0.0
        %978 = vmatprep.subr.mxu0 0.0
        %979 = vmatpush1.xpose.msra.mxu0 0.0
        %980 = vmatprep.subr.mxu0 0.0
        %981 = vmatpush1.xpose.msra.mxu0 0.0
        %982 = vmatprep.subr.mxu0 0.0
        %983 = vmatpush1.xpose.msra.mxu0 0.0
        %984 = vmatprep.subr.mxu0 0.0
        %985 = vmatpush1.xpose.msra.mxu0 0.0
        %986 = vmatprep.subr.mxu0 0.0
        %987 = vmatpush1.xpose.msra.mxu0 0.0
        %988 = vmatprep.subr.mxu0 0.0
        %989 = vmatpush1.xpose.msra.mxu0 0.0
        %990 = vmatprep.subr.mxu0 0.0
        %991 = vmatpush1.xpose.msra.mxu0 0.0
        %992 = vmatprep.subr.mxu0 0.0
        %993 = vmatpush1.xpose.msra.mxu0 0.0
        %994 = vmatprep.subr.mxu0 0.0
        %995 = vmatpush1.xpose.msra.mxu0 0.0
        %996 = vmatprep.subr.mxu0 0.0
        %997 = vmatpush1.xpose.msra.mxu0 0.0
        %998 = vmatprep.subr.mxu0 0.0
        %999 = vmatpush1.xpose.msra.mxu0 0.0
        %1000 = vmatprep.subr.mxu0 0.0
        %1001 = vmatpush1.xpose.msra.mxu0 0.0
        %1002 = vmatprep.subr.mxu0 0.0
        %1003 = vmatpush1.xpose.msra.mxu0 0.0
        %1004 = vmatprep.subr.mxu0 0.0
        %1005 = vmatpush1.xpose.msra.mxu0 0.0
        %1006 = vmatprep.subr.mxu0 0.0
        %1007 = vmatpush1.xpose.msra.mxu0 0.0
        %1008 = vmatprep.subr.mxu0 0.0
        %1009 = vmatpush1.xpose.msra.mxu0 0.0
        %1010 = vmatprep.subr.mxu0 0.0
        %1011 = vmatpush1.xpose.msra.mxu0 0.0
        %1012 = vmatprep.subr.mxu0 0.0
        %1013 = vmatpush1.xpose.msra.mxu0 0.0
        %1014 = vmatprep.subr.mxu0 0.0
        %1015 = vmatpush1.xpose.msra.mxu0 0.0
        %1016 = vmatprep.subr.mxu0 0.0
        %1017 = vmatpush1.xpose.msra.mxu0 0.0
        %1018 = vmatprep.subr.mxu0 0.0
        %1019 = vmatpush1.xpose.msra.mxu0 0.0
        %1020 = vmatprep.subr.mxu0 0.0
        %1021 = vmatpush1.xpose.msra.mxu0 0.0
        %1022 = vmatprep.mubr.f32.mxu0 0.0
        %1023 = vmatmul.mubr.f32.gmra.mrb[0].mxu0 %v952
        %v1024 = vpop.f32.mrb[0].mxu0
        %v1025 = vadd.f32 0.0, %v1024
        %v1026 = vpop.f32.mrb[0].mxu0
        %1027 = vdwg.mxu0
        %v1028 = vmul.f32 %v1025, 0.17677669
        %v1029 = vsel %vm677, %v1028, -inf
        %1030 = vmax.xlane.f32.xlu0 %v1029
        %v1031 = vpop.xlane.xlu0 %1030
        %v1032 = vsub.f32 %v1028, %v1031
        %v1033 = vmul.f32 %v1032, 1.442695
        %v1034 = vpow.pop %v1033
        %v1035 = vsel %vm677, %v1034, 0.0
        %1036 = vadd.xlane.f32.xlu0 %v1035
        %v1037 = vpop.xlane.xlu0 %1036
        %v1038 = vrcp.pop %v1037
        %v1039 = vmul.f32 %v1034, %v1038
        %1040 = vrot.lane.b32.xlu0 %v587, 112
        %v1041 = vpop.permute.xlu0 %1040
        %1042 = vrot.lane.b32.xlu0 %v593, 112
        %v1043 = vpop.permute.xlu0 %1042
        %v1047 = vsel %vm677, %v1039, 0
        %1049 = vmatprep.subr.mxu0 0.0
        %1050 = vmatpush1.msra.mxu0 %v1041
        %1051 = vmatprep.subr.mxu0 0.0
        %1052 = vmatpush1.msra.mxu0 %v1043
        %1053 = vmatprep.subr.mxu0 0.0
        %1054 = vmatpush1.msra.mxu0 0.0
        %1055 = vmatprep.subr.mxu0 0.0
        %1056 = vmatpush1.msra.mxu0 0.0
        %1057 = vmatprep.subr.mxu0 0.0
        %1058 = vmatpush1.msra.mxu0 0.0
        %1059 = vmatprep.subr.mxu0 0.0
        %1060 = vmatpush1.msra.mxu0 0.0
        %1061 = vmatprep.subr.mxu0 0.0
        %1062 = vmatpush1.msra.mxu0 0.0
        %1063 = vmatprep.subr.mxu0 0.0
        %1064 = vmatpush1.msra.mxu0 0.0
        %1065 = vmatprep.subr.mxu0 0.0
        %1066 = vmatpush1.msra.mxu0 0.0
        %1067 = vmatprep.subr.mxu0 0.0
        %1068 = vmatpush1.msra.mxu0 0.0
        %1069 = vmatprep.subr.mxu0 0.0
        %1070 = vmatpush1.msra.mxu0 0.0
        %1071 = vmatprep.subr.mxu0 0.0
        %1072 = vmatpush1.msra.mxu0 0.0
        %1073 = vmatprep.subr.mxu0 0.0
        %1074 = vmatpush1.msra.mxu0 0.0
        %1075 = vmatprep.subr.mxu0 0.0
        %1076 = vmatpush1.msra.mxu0 0.0
        %1077 = vmatprep.subr.mxu0 0.0
        %1078 = vmatpush1.msra.mxu0 0.0
        %1079 = vmatprep.subr.mxu0 0.0
        %1080 = vmatpush1.msra.mxu0 0.0
        %1081 = vmatprep.subr.mxu0 0.0
        %1082 = vmatpush1.msra.mxu0 0.0
        %1083 = vmatprep.subr.mxu0 0.0
        %1084 = vmatpush1.msra.mxu0 0.0
        %1085 = vmatprep.subr.mxu0 0.0
        %1086 = vmatpush1.msra.mxu0 0.0
        %1087 = vmatprep.subr.mxu0 0.0
        %1088 = vmatpush1.msra.mxu0 0.0
        %1089 = vmatprep.subr.mxu0 0.0
        %1090 = vmatpush1.msra.mxu0 0.0
        %1091 = vmatprep.subr.mxu0 0.0
        %1092 = vmatpush1.msra.mxu0 0.0
        %1093 = vmatprep.subr.mxu0 0.0
        %1094 = vmatpush1.msra.mxu0 0.0
        %1095 = vmatprep.subr.mxu0 0.0
        %1096 = vmatpush1.msra.mxu0 0.0
        %1097 = vmatprep.subr.mxu0 0.0
        %1098 = vmatpush1.msra.mxu0 0.0
        %1099 = vmatprep.subr.mxu0 0.0
        %1100 = vmatpush1.msra.mxu0 0.0
        %1101 = vmatprep.subr.mxu0 0.0
        %1102 = vmatpush1.msra.mxu0 0.0
        %1103 = vmatprep.subr.mxu0 0.0
        %1104 = vmatpush1.msra.mxu0 0.0
        %1105 = vmatprep.subr.mxu0 0.0
        %1106 = vmatpush1.msra.mxu0 0.0
        %1107 = vmatprep.subr.mxu0 0.0
        %1108 = vmatpush1.msra.mxu0 0.0
        %1109 = vmatprep.subr.mxu0 0.0
        %1110 = vmatpush1.msra.mxu0 0.0
        %1111 = vmatprep.subr.mxu0 0.0
        %1112 = vmatpush1.msra.mxu0 0.0
        %1113 = vmatprep.mubr.f32.mxu0 0.0
        %1114 = vmatmul.mubr.f32.gmra.mrb[0].mxu0 %v1047
        %v1115 = vpop.f32.mrb[0].mxu0
        %v1116 = vadd.f32 0.0, %v1115
        %v1117 = vpop.f32.mrb[0].mxu0
        %1118 = vdwg.mxu0
        %1120 = vrot.lane.b32.xlu0 %v1116, 16
        %v1121 = vpop.permute.xlu0 %1120
        %v1123 = vadd.f32 %v489, %v1121
        %vm1124 = vcmask 195712
        %1125 = vst.msk [vmem:[#allocation2] sm:$0xff] %vm1124, %v1123
        %1126 = vrot.lane.b32.xlu0 %v489, 104
        %v1127 = vpop.permute.xlu0 %1126
        %1128 = vrot.lane.b32.xlu0 %v585, 104
        %v1129 = vpop.permute.xlu0 %1128
        %1130 = vrot.lane.b32.xlu0 %v591, 104
        %v1131 = vpop.permute.xlu0 %1130
        %v1132 = vsel %vm596, %v1127, 0
        %v1134 = vsel %vm596, %v1129, 0
        %v1136 = vsel %vm596, %v1131, 0
        %1138 = vmatprep.subr.mxu0 0.0
        %1139 = vmatpush1.xpose.msra.mxu0 %v1134
        %1140 = vmatprep.subr.mxu0 0.0
        %1141 = vmatpush1.xpose.msra.mxu0 %v1136
        %1142 = vmatprep.subr.mxu0 0.0
        %1143 = vmatpush1.xpose.msra.mxu0 0.0
        %1144 = vmatprep.subr.mxu0 0.0
        %1145 = vmatpush1.xpose.msra.mxu0 0.0
        %1146 = vmatprep.subr.mxu0 0.0
        %1147 = vmatpush1.xpose.msra.mxu0 0.0
        %1148 = vmatprep.subr.mxu0 0.0
        %1149 = vmatpush1.xpose.msra.mxu0 0.0
        %1150 = vmatprep.subr.mxu0 0.0
        %1151 = vmatpush1.xpose.msra.mxu0 0.0
        %1152 = vmatprep.subr.mxu0 0.0
        %1153 = vmatpush1.xpose.msra.mxu0 0.0
        %1154 = vmatprep.subr.mxu0 0.0
        %1155 = vmatpush1.xpose.msra.mxu0 0.0
        %1156 = vmatprep.subr.mxu0 0.0
        %1157 = vmatpush1.xpose.msra.mxu0 0.0
        %1158 = vmatprep.subr.mxu0 0.0
        %1159 = vmatpush1.xpose.msra.mxu0 0.0
        %1160 = vmatprep.subr.mxu0 0.0
        %1161 = vmatpush1.xpose.msra.mxu0 0.0
        %1162 = vmatprep.subr.mxu0 0.0
        %1163 = vmatpush1.xpose.msra.mxu0 0.0
        %1164 = vmatprep.subr.mxu0 0.0
        %1165 = vmatpush1.xpose.msra.mxu0 0.0
        %1166 = vmatprep.subr.mxu0 0.0
        %1167 = vmatpush1.xpose.msra.mxu0 0.0
        %1168 = vmatprep.subr.mxu0 0.0
        %1169 = vmatpush1.xpose.msra.mxu0 0.0
        %1170 = vmatprep.subr.mxu0 0.0
        %1171 = vmatpush1.xpose.msra.mxu0 0.0
        %1172 = vmatprep.subr.mxu0 0.0
        %1173 = vmatpush1.xpose.msra.mxu0 0.0
        %1174 = vmatprep.subr.mxu0 0.0
        %1175 = vmatpush1.xpose.msra.mxu0 0.0
        %1176 = vmatprep.subr.mxu0 0.0
        %1177 = vmatpush1.xpose.msra.mxu0 0.0
        %1178 = vmatprep.subr.mxu0 0.0
        %1179 = vmatpush1.xpose.msra.mxu0 0.0
        %1180 = vmatprep.subr.mxu0 0.0
        %1181 = vmatpush1.xpose.msra.mxu0 0.0
        %1182 = vmatprep.subr.mxu0 0.0
        %1183 = vmatpush1.xpose.msra.mxu0 0.0
        %1184 = vmatprep.subr.mxu0 0.0
        %1185 = vmatpush1.xpose.msra.mxu0 0.0
        %1186 = vmatprep.subr.mxu0 0.0
        %1187 = vmatpush1.xpose.msra.mxu0 0.0
        %1188 = vmatprep.subr.mxu0 0.0
        %1189 = vmatpush1.xpose.msra.mxu0 0.0
        %1190 = vmatprep.subr.mxu0 0.0
        %1191 = vmatpush1.xpose.msra.mxu0 0.0
        %1192 = vmatprep.subr.mxu0 0.0
        %1193 = vmatpush1.xpose.msra.mxu0 0.0
        %1194 = vmatprep.subr.mxu0 0.0
        %1195 = vmatpush1.xpose.msra.mxu0 0.0
        %1196 = vmatprep.subr.mxu0 0.0
        %1197 = vmatpush1.xpose.msra.mxu0 0.0
        %1198 = vmatprep.subr.mxu0 0.0
        %1199 = vmatpush1.xpose.msra.mxu0 0.0
        %1200 = vmatprep.subr.mxu0 0.0
        %1201 = vmatpush1.xpose.msra.mxu0 0.0
        %1202 = vmatprep.mubr.f32.mxu0 0.0
        %1203 = vmatmul.mubr.f32.gmra.mrb[0].mxu0 %v1132
        %v1204 = vpop.f32.mrb[0].mxu0
        %v1205 = vadd.f32 0.0, %v1204
        %v1206 = vpop.f32.mrb[0].mxu0
        %1207 = vdwg.mxu0
        %v1208 = vmul.f32 %v1205, 0.17677669
        %v1209 = vsel %vm677, %v1208, -inf
        %1210 = vmax.xlane.f32.xlu0 %v1209
        %v1211 = vpop.xlane.xlu0 %1210
        %v1212 = vsub.f32 %v1208, %v1211
        %v1213 = vmul.f32 %v1212, 1.442695
        %v1214 = vpow.pop %v1213
        %v1215 = vsel %vm677, %v1214, 0.0
        %1216 = vadd.xlane.f32.xlu0 %v1215
        %v1217 = vpop.xlane.xlu0 %1216
        %v1218 = vrcp.pop %v1217
        %v1219 = vmul.f32 %v1214, %v1218
        %1220 = vrot.lane.b32.xlu0 %v587, 104
        %v1221 = vpop.permute.xlu0 %1220
        %1222 = vrot.lane.b32.xlu0 %v593, 104
        %v1223 = vpop.permute.xlu0 %1222
        %v1227 = vsel %vm677, %v1219, 0
        %1229 = vmatprep.subr.mxu0 0.0
        %1230 = vmatpush1.msra.mxu0 %v1221
        %1231 = vmatprep.subr.mxu0 0.0
        %1232 = vmatpush1.msra.mxu0 %v1223
        %1233 = vmatprep.subr.mxu0 0.0
        %1234 = vmatpush1.msra.mxu0 0.0
        %1235 = vmatprep.subr.mxu0 0.0
        %1236 = vmatpush1.msra.mxu0 0.0
        %1237 = vmatprep.subr.mxu0 0.0
        %1238 = vmatpush1.msra.mxu0 0.0
        %1239 = vmatprep.subr.mxu0 0.0
        %1240 = vmatpush1.msra.mxu0 0.0
        %1241 = vmatprep.subr.mxu0 0.0
        %1242 = vmatpush1.msra.mxu0 0.0
        %1243 = vmatprep.subr.mxu0 0.0
        %1244 = vmatpush1.msra.mxu0 0.0
        %1245 = vmatprep.subr.mxu0 0.0
        %1246 = vmatpush1.msra.mxu0 0.0
        %1247 = vmatprep.subr.mxu0 0.0
        %1248 = vmatpush1.msra.mxu0 0.0
        %1249 = vmatprep.subr.mxu0 0.0
        %1250 = vmatpush1.msra.mxu0 0.0
        %1251 = vmatprep.subr.mxu0 0.0
        %1252 = vmatpush1.msra.mxu0 0.0
        %1253 = vmatprep.subr.mxu0 0.0
        %1254 = vmatpush1.msra.mxu0 0.0
        %1255 = vmatprep.subr.mxu0 0.0
        %1256 = vmatpush1.msra.mxu0 0.0
        %1257 = vmatprep.subr.mxu0 0.0
        %1258 = vmatpush1.msra.mxu0 0.0
        %1259 = vmatprep.subr.mxu0 0.0
        %1260 = vmatpush1.msra.mxu0 0.0
        %1261 = vmatprep.subr.mxu0 0.0
        %1262 = vmatpush1.msra.mxu0 0.0
        %1263 = vmatprep.subr.mxu0 0.0
        %1264 = vmatpush1.msra.mxu0 0.0
        %1265 = vmatprep.subr.mxu0 0.0
        %1266 = vmatpush1.msra.mxu0 0.0
        %1267 = vmatprep.subr.mxu0 0.0
        %1268 = vmatpush1.msra.mxu0 0.0
        %1269 = vmatprep.subr.mxu0 0.0
        %1270 = vmatpush1.msra.mxu0 0.0
        %1271 = vmatprep.subr.mxu0 0.0
        %1272 = vmatpush1.msra.mxu0 0.0
        %1273 = vmatprep.subr.mxu0 0.0
        %1274 = vmatpush1.msra.mxu0 0.0
        %1275 = vmatprep.subr.mxu0 0.0
        %1276 = vmatpush1.msra.mxu0 0.0
        %1277 = vmatprep.subr.mxu0 0.0
        %1278 = vmatpush1.msra.mxu0 0.0
        %1279 = vmatprep.subr.mxu0 0.0
        %1280 = vmatpush1.msra.mxu0 0.0
        %1281 = vmatprep.subr.mxu0 0.0
        %1282 = vmatpush1.msra.mxu0 0.0
        %1283 = vmatprep.subr.mxu0 0.0
        %1284 = vmatpush1.msra.mxu0 0.0
        %1285 = vmatprep.subr.mxu0 0.0
        %1286 = vmatpush1.msra.mxu0 0.0
        %1287 = vmatprep.subr.mxu0 0.0
        %1288 = vmatpush1.msra.mxu0 0.0
        %1289 = vmatprep.subr.mxu0 0.0
        %1290 = vmatpush1.msra.mxu0 0.0
        %1291 = vmatprep.subr.mxu0 0.0
        %1292 = vmatpush1.msra.mxu0 0.0
        %1293 = vmatprep.mubr.f32.mxu0 0.0
        %1294 = vmatmul.mubr.f32.gmra.mrb[0].mxu0 %v1227
        %v1295 = vpop.f32.mrb[0].mxu0
        %v1296 = vadd.f32 0.0, %v1295
        %v1297 = vpop.f32.mrb[0].mxu0
        %1298 = vdwg.mxu0
        %1300 = vrot.lane.b32.xlu0 %v1296, 24
        %v1301 = vpop.permute.xlu0 %1300
        %v1303 = vadd.f32 %v489, %v1301
        %vm1304 = vcmask 261312
        %1305 = vst.msk [vmem:[#allocation2] sm:$0xff] %vm1304, %v1303
        %v1306 = vld [vmem:[#allocation2] sm:$0xff]
        %v1307 = vld [vmem:[#allocation11] sm:$0xff]
        %v1308 = vld [vmem:[#allocation11 + $0x8] sm:$0xff]
        %v1309 = vld [vmem:[#allocation11 + $0x10] sm:$0xff]
        %v1310 = vld [vmem:[#allocation11 + $0x18] sm:$0xff]
        %v1311 = vld [vmem:[#allocation11 + $0x20] sm:$0xff]
        %v1312 = vld [vmem:[#allocation11 + $0x28] sm:$0xff]
        %v1313 = vld [vmem:[#allocation11 + $0x30] sm:$0xff]
        %v1314 = vld [vmem:[#allocation11 + $0x38] sm:$0xff]
        %v1315 = vld [vmem:[#allocation11 + $0x40] sm:$0xff]
        %v1316 = vld [vmem:[#allocation11 + $0x48] sm:$0xff]
        %v1317 = vld [vmem:[#allocation11 + $0x50] sm:$0xff]
        %v1318 = vld [vmem:[#allocation11 + $0x58] sm:$0xff]
        %v1319 = vld [vmem:[#allocation11 + $0x60] sm:$0xff]
        %v1320 = vld [vmem:[#allocation11 + $0x68] sm:$0xff]
        %v1321 = vld [vmem:[#allocation11 + $0x70] sm:$0xff]
        %v1322 = vld [vmem:[#allocation11 + $0x78] sm:$0xff]
        %v1323 = vld [vmem:[%s7] sm:$0x1]
        %v1325 = vlaneseq
        %v1326 = vshrl.u32 %v1325, 7
        %v1327 = vsub.s32 0, %v1326
        %v1328 = vrot.slane %v1323, %v1327
        %1330 = vmatprep.subr.mxu0 0.0
        %1331 = vmatpush1.msra.mxu0 %v1307
        %1332 = vmatprep.subr.mxu0 0.0
        %1333 = vmatpush1.msra.mxu0 %v1308
        %1334 = vmatprep.subr.mxu0 0.0
        %1335 = vmatpush1.msra.mxu0 %v1309
        %1336 = vmatprep.subr.mxu0 0.0
        %1337 = vmatpush1.msra.mxu0 %v1310
        %1338 = vmatprep.subr.mxu0 0.0
        %1339 = vmatpush1.msra.mxu0 %v1311
        %1340 = vmatprep.subr.mxu0 0.0
        %1341 = vmatpush1.msra.mxu0 %v1312
        %1342 = vmatprep.subr.mxu0 0.0
        %1343 = vmatpush1.msra.mxu0 %v1313
        %1344 = vmatprep.subr.mxu0 0.0
        %1345 = vmatpush1.msra.mxu0 %v1314
        %1346 = vmatprep.subr.mxu0 0.0
        %1347 = vmatpush1.msra.mxu0 %v1315
        %1348 = vmatprep.subr.mxu0 0.0
        %1349 = vmatpush1.msra.mxu0 %v1316
        %1350 = vmatprep.subr.mxu0 0.0
        %1351 = vmatpush1.msra.mxu0 %v1317
        %1352 = vmatprep.subr.mxu0 0.0
        %1353 = vmatpush1.msra.mxu0 %v1318
        %1354 = vmatprep.subr.mxu0 0.0
        %1355 = vmatpush1.msra.mxu0 %v1319
        %1356 = vmatprep.subr.mxu0 0.0
        %1357 = vmatpush1.msra.mxu0 %v1320
        %1358 = vmatprep.subr.mxu0 0.0
        %1359 = vmatpush1.msra.mxu0 %v1321
        %1360 = vmatprep.subr.mxu0 0.0
        %1361 = vmatpush1.msra.mxu0 %v1322
        %1362 = vmatprep.subr.mxu0 0.0
        %1363 = vmatpush1.msra.mxu0 0.0
        %1364 = vmatprep.subr.mxu0 0.0
        %1365 = vmatpush1.msra.mxu0 0.0
        %1366 = vmatprep.subr.mxu0 0.0
        %1367 = vmatpush1.msra.mxu0 0.0
        %1368 = vmatprep.subr.mxu0 0.0
        %1369 = vmatpush1.msra.mxu0 0.0
        %1370 = vmatprep.subr.mxu0 0.0
        %1371 = vmatpush1.msra.mxu0 0.0
        %1372 = vmatprep.subr.mxu0 0.0
        %1373 = vmatpush1.msra.mxu0 0.0
        %1374 = vmatprep.subr.mxu0 0.0
        %1375 = vmatpush1.msra.mxu0 0.0
        %1376 = vmatprep.subr.mxu0 0.0
        %1377 = vmatpush1.msra.mxu0 0.0
        %1378 = vmatprep.subr.mxu0 0.0
        %1379 = vmatpush1.msra.mxu0 0.0
        %1380 = vmatprep.subr.mxu0 0.0
        %1381 = vmatpush1.msra.mxu0 0.0
        %1382 = vmatprep.subr.mxu0 0.0
        %1383 = vmatpush1.msra.mxu0 0.0
        %1384 = vmatprep.subr.mxu0 0.0
        %1385 = vmatpush1.msra.mxu0 0.0
        %1386 = vmatprep.subr.mxu0 0.0
        %1387 = vmatpush1.msra.mxu0 0.0
        %1388 = vmatprep.subr.mxu0 0.0
        %1389 = vmatpush1.msra.mxu0 0.0
        %1390 = vmatprep.subr.mxu0 0.0
        %1391 = vmatpush1.msra.mxu0 0.0
        %1392 = vmatprep.subr.mxu0 0.0
        %1393 = vmatpush1.msra.mxu0 0.0
        %1394 = vmatprep.mubr.f32.mxu0 0.0
        %1395 = vmatmul.mubr.f32.gmra.mrb[0].mxu0 %v1306
        %v1396 = vpop.f32.mrb[0].mxu0
        %v1397 = vadd.f32 %v1328, %v1396
        %v1398 = vpop.f32.mrb[0].mxu0
        %1399 = vdwg.mxu0
        %v1400 = vmax.f32 %v1397, 0.0
        %v1401 = vadd.f32 %v1306, %v1400
        %1402 = vst [vmem:[%s403] sm:$0xff] %v1401
        %s1403 = sand.u32 %s215, 1
        %s1404 = scalar_lea.sflag [#allocation5], %s1403
        %s1405 = sand.u32 %s215, 1
        %s1406 = smul.addr %s1405, 8
        %s1407 = scalar_lea.vmem [#allocation12], %s1406
        // Predicated region
        $region73: #{tpu_custom_call.1} parent=51 // pred_check
          %p1408 = pneg %p225
        $region74: #{tpu_custom_call.1} parent=51 // pred_check_branch
          %1410 = sbr.rel (%p1408) target = $region76
        $region75: #{tpu_custom_call.1} parent=51 // pred_region
          %s1412 = ssub.s32 128, 128
          %1413 = vsyncadd %s1404, %s1412
          %s1414 = smul.addr %s29, 128
          %s1415 = scalar_lea.hbm %s8, %s1414
          %s1417 = sshll.u32 %s1407, 4
          %s1418 = int_to_ptr.vmem [resolvable:$true] %s1417
          %1420 = dma.vmem_to_hbm [thread:$0]  %s1418, 128, %s1415, %s1404
        $region76: #{tpu_custom_call.1} parent=51 // pred_fallthru
          _
      $region52: #{tpu_custom_call.1} parent=5 // pred_fallthru
        _
      %p1421 = scmp.le.s32.totalorder 2, %s24
      // Predicated region
      $region77: #{tpu_custom_call.1} parent=5 // pred_check
        %p1422 = pneg %p1421
      $region78: #{tpu_custom_call.1} parent=5 // pred_check_branch
        %1424 = sbr.rel (%p1422) target = $region80
      $region79: #{tpu_custom_call.1} parent=5 // pred_region
        %s1425 = ssub.s32 %s24, 2
        // Predicated region
        $region81: #{tpu_custom_call.1} parent=79 // pred_check
          %p1426 = pneg %p231
        $region82: #{tpu_custom_call.1} parent=79 // pred_check_branch
          %1428 = sbr.rel (%p1426) target = $region84
        $region83: #{tpu_custom_call.1} parent=79 // pred_region
          %s1429 = sand.u32 %s216, 1
          %s1430 = scalar_lea.sflag [#allocation5], %s1429
          %s1431 = sand.u32 %s216, 1
          %s1432 = smul.addr %s1431, 8
          %s1433 = scalar_lea.vmem [#allocation12], %s1432
          %1434 = dma.done %s1430, 128
        $region84: #{tpu_custom_call.1} parent=79 // pred_fallthru
          _
      $region80: #{tpu_custom_call.1} parent=5 // pred_fallthru
        _
    $region6: #{tpu_custom_call.1} parent=1 // loop_footer
      %s28 = sadd.s32 1, %s24
    $region7: #{tpu_custom_call.1} parent=1 // loop_footer_branch
      %23 = sbr.rel target = $region3
    $region8: #{tpu_custom_call.1} parent=1 // loop_exit
      _
    %1435 = vsyncpa [#allocation4], 1
    %s1436 = scalar_lea.sflag [#allocation4], 1
    %1437 = vsyncpa %s1436, 1
    %1438 = vsyncpa [#allocation7], 1
    %s1439 = scalar_lea.sflag [#allocation7], 1
    %1440 = vsyncpa %s1439, 1
    %1441 = vsyncpa [#allocation10], 1
    %1442 = vsyncpa [#allocation5], 1
    %s1443 = scalar_lea.sflag [#allocation5], 1
    %1444 = vsyncpa %s1443, 1

</llo_original>
